<compile_context>
chip_gen: v5e
topology: v5e:2x2
jax: 0.10.0
libtpu: 0.0.40
codegen_flags: <defaults>
</compile_context>

<pallas_src>
import functools

import jax
import jax.numpy as jnp
from jax.experimental import pallas as pl
from jax.experimental.pallas import tpu as pltpu

SIGMOID_BIAS = 2.0
LEAKY_SLOPE = 0.01  # PyTorch nn.LeakyReLU default negative_slope
LANE = 128
SUBLANE = 8


def _round_up(x, m):
    return (x + m - 1) // m * m


def _leaky_relu(h):
    return jnp.where(h > 0, h, LEAKY_SLOPE * h)


def _vmem_capacity_bytes():
    """Physical VMEM per TensorCore; conservative (v7x-sized) default if the
    query is unavailable on this JAX version."""
    try:
        return int(pltpu.get_tpu_info().vmem_capacity_bytes)
    except Exception:
        return 64 << 20


def _affine_coupling_kernel(*refs, n_layers, reverse, half, half_p, tb, batch,
                            mask_rows, compute_dtype):
    # refs = (x1, x2, w0, b0, ..., w_{L-1}, b_{L-1}, x1_out, ldj_out)
    x1_ref, x2_ref = refs[0], refs[1]
    param_refs = refs[2:2 + 2 * n_layers]
    x1_out_ref, ldj_ref = refs[-2], refs[-1]

    # --- MLP over the (tb, half) tile.  Weights are VMEM-resident; matmuls
    # run on the MXU in `compute_dtype` with f32 accumulation. ---------------
    h = x2_ref[...].astype(compute_dtype)
    if half_p != half:
        # One-time 128-lane zero pad in VMEM (padded weight rows are zero),
        # instead of a padded f32 copy of x2 in HBM.
        h = jnp.concatenate(
            [h, jnp.zeros((x2_ref.shape[0], half_p - half), compute_dtype)],
            axis=1)
    for i in range(n_layers):
        w = param_refs[2 * i][...]                  # (fan_in_p, fan_out_p)
        b = param_refs[2 * i + 1][...]              # (1, fan_out_p) f32
        acc = jnp.dot(h, w, preferred_element_type=jnp.float32) + b
        if i < n_layers - 1:                        # LeakyReLU on all but last
            h = _leaky_relu(acc).astype(compute_dtype)
        else:
            h = acc                                 # final layer stays f32

    # Final-layer columns were pre-permuted in pack_params: [s_log | t] halves
    # at 128-aligned starts; only the `half` valid columns are touched, so no
    # column mask is needed in the log-det reduction.
    s_log = h[:, :half]
    t = h[:, half_p:half_p + half]

    # log s = log sigmoid(s_log + bias) = -softplus(-z), numerically stable.
    # (sigmoid > 0, so |s| == s; exp/log1p ride the otherwise-idle EUP slot.)
    z = s_log + SIGMOID_BIAS
    log_s = -(jnp.maximum(-z, 0.0) + jnp.log1p(jnp.exp(-jnp.abs(z))))

    if mask_rows:  # only emitted when the last batch tile is partial
        row = jax.lax.broadcasted_iota(jnp.int32, log_s.shape, 0)
        valid = (row + pl.program_id(0) * tb) < batch
        ldj_partial = jnp.sum(jnp.where(valid, log_s, 0.0))
    else:
        ldj_partial = jnp.sum(log_s)
    # Lane-dense (1, 8, 128) partial per tile; the wrapper sums [:, 0, 0].
    ldj_ref[...] = jnp.broadcast_to(ldj_partial, ldj_ref.shape)

    x1 = x1_ref[...].astype(jnp.float32)
    if not reverse:
        s = jnp.exp(log_s)
        x1_out_ref[...] = (s * x1 + t).astype(x1_out_ref.dtype)
    else:
        # inv_s = 1/sigmoid(z) computed as exp(softplus(-z)): no f32 divide
        # chain, no approx reciprocal -> exact invertibility preserved.
        inv_s = jnp.exp(-log_s)
        x1_out_ref[...] = ((x1 - t) * inv_s).astype(x1_out_ref.dtype)


def pack_params(weights, biases, compute_dtype=jnp.bfloat16):
    """One-time parameter packing (hoisted out of the per-call path).

    * permutes the final layer's output columns to [even | odd] so the kernel
      reads contiguous s_log / t halves at 128-aligned starts,
    * zero-pads every matmul dimension to a multiple of 128 lanes,
    * casts weights to the MXU compute dtype (biases stay f32).
    weights[i]: (fan_in, fan_out) = torch Linear weight transposed.
    """
    n = len(weights)
    D = int(weights[-1].shape[1])
    half = D // 2
    half_p = _round_up(max(half, 1), LANE)

    packed = []
    for i in range(n):
        w = jnp.asarray(weights[i], jnp.float32)
        b = jnp.asarray(biases[i], jnp.float32)
        fan_in, fan_out = w.shape
        fan_in_p = half_p if i == 0 else _round_up(fan_in, LANE)
        if i == n - 1:
            # Split final columns into s_log (even) / t (odd) halves, pad each.
            w_s, w_t = w[:, 0::2], w[:, 1::2]
            b_s, b_t = b[0::2], b[1::2]
            w_s = jnp.pad(w_s, ((0, fan_in_p - fan_in), (0, half_p - half)))
            w_t = jnp.pad(w_t, ((0, fan_in_p - fan_in), (0, half_p - half)))
            w_p = jnp.concatenate([w_s, w_t], axis=1)
            b_p = jnp.concatenate([jnp.pad(b_s, (0, half_p - half)),
                                   jnp.pad(b_t, (0, half_p - half))])
        else:
            fan_out_p = _round_up(fan_out, LANE)
            w_p = jnp.pad(w, ((0, fan_in_p - fan_in), (0, fan_out_p - fan_out)))
            b_p = jnp.pad(b, (0, fan_out_p - fan_out))
        packed.append((w_p.astype(compute_dtype),
                       b_p.reshape(1, -1).astype(jnp.float32)))

    return {"params": packed, "half": half, "half_p": half_p,
            "n_layers": n, "compute_dtype": compute_dtype}


def _choose_tb(B, half, half_p, max_width, compute_dtype, vmem_cap):
    """Batch tile: big enough to hide DMA and amortize the ~0.35us grid-step
    overhead, small enough for the double-buffered working set; capped so a
    v7x chip (2 TensorCores) gets at least two grid tiles."""
    if B <= SUBLANE:
        return B                                  # single full-batch block
    cd = jnp.dtype(compute_dtype).itemsize
    # Bigger activation budget on the 128 MiB-VMEM parts (v5e / v6e).
    budget = (12 << 20) if vmem_cap <= (64 << 20) else (28 << 20)
    per_row = (2 * (4 + cd + 4) * half            # dbl-buffered x1 / x2 / out
               + (4 + cd) * 3 * max_width         # live intermediate acts
               + 8 * 2 * half_p)                  # epilogue temporaries
    tb = max(SUBLANE, (budget // per_row) // SUBLANE * SUBLANE)
    tb = min(tb, 1024)
    tb = min(tb, _round_up(pl.cdiv(B, 2), SUBLANE))  # >=2 tiles for v7x 2 TCs
    return int(min(tb, _round_up(B, SUBLANE)))


def affine_coupling_blocked(x1, x2, packed, reverse=False):
    """Core op in blocked (de-interleaved) layout.

    x1: (B, half) f32 (transformed half).  x2: (B, half) any float dtype
    (conditioning half; cast to the MXU compute dtype for its DMA stream).
    Returns (x1_new (B, half) f32, ldj_diff scalar).  Stacked flows should
    chain this directly and interleave only at model ingress / egress.
    """
    B, half = x1.shape
    assert half == packed["half"], "packed params do not match input width"
    half_p = packed["half_p"]
    n_layers = packed["n_layers"]
    cd = packed["compute_dtype"]

    params_flat = []
    max_width = 2 * half_p
    for w, b in packed["params"]:
        params_flat += [w, b]
        max_width = max(max_width, w.shape[1])

    vmem_cap = _vmem_capacity_bytes()
    tb = _choose_tb(B, half, half_p, max_width, cd, vmem_cap)
    n_tiles = pl.cdiv(B, tb)
    mask_rows = (n_tiles * tb != B)               # static, trace-time check

    x1_c = x1.astype(jnp.float32)
    x2_c = x2.astype(cd)   # bf16 HBM stream in production (no-op if already)

    # VMEM budget: resident weights (counted twice to also cover the
    # double-buffered fallback) + activation tiles, capped per generation.
    weight_bytes = sum(p.size * p.dtype.itemsize for p in params_flat)
    cdb = jnp.dtype(cd).itemsize
    act_bytes = tb * (2 * (4 + cdb + 4) * half + (4 + cdb) * 3 * max_width
                      + 8 * 2 * half_p)
    limit_cap = (48 << 20) if vmem_cap <= (64 << 20) else (64 << 20)
    vmem_limit = int(min(limit_cap,
                         max(32 << 20, 2 * weight_bytes + act_bytes + (4 << 20))))

    kernel = functools.partial(
        _affine_coupling_kernel, n_layers=n_layers, reverse=reverse,
        half=half, half_p=half_p, tb=tb, batch=B, mask_rows=mask_rows,
        compute_dtype=cd)

    out_shape = (jax.ShapeDtypeStruct((B, half), jnp.float32),
                 jax.ShapeDtypeStruct((n_tiles, SUBLANE, LANE), jnp.float32))
    out_specs = (pl.BlockSpec((tb, half), lambda i: (i, 0)),
                 pl.BlockSpec((1, SUBLANE, LANE), lambda i: (i, 0, 0)))
    cparams = pltpu.CompilerParams(
        dimension_semantics=("parallel",),        # megacore-shards batch axis
        vmem_limit_bytes=vmem_limit)

    def run(single_buffer_weights):
        in_specs = [pl.BlockSpec((tb, half), lambda i: (i, 0)),   # x1 (f32)
                    pl.BlockSpec((tb, half), lambda i: (i, 0))]   # x2 (cd)
        for p in params_flat:
            # Constant index_map: weights/biases DMA once and stay resident.
            if single_buffer_weights:
                in_specs.append(pl.BlockSpec(p.shape, lambda i: (0, 0),
                                             pipeline_mode=pl.Buffered(1)))
            else:
                in_specs.append(pl.BlockSpec(p.shape, lambda i: (0, 0)))
        return pl.pallas_call(
            kernel, out_shape=out_shape, grid=(n_tiles,),
            in_specs=in_specs, out_specs=out_specs,
            compiler_params=cparams)(x1_c, x2_c, *params_flat)

    try:
        # Single-buffer the resident params (constant index_map never
        # refetches, so the second buffer is pure VMEM waste on v7x).
        x1_new, ldj_parts = run(single_buffer_weights=True)
    except Exception:
        # TODO(synk): this JAX/Mosaic rejects pipeline_mode=pl.Buffered(1);
        # fall back to default double-buffered parameter blocks.
        x1_new, ldj_parts = run(single_buffer_weights=False)

    ldj_diff = jnp.sum(ldj_parts[:, 0, 0])
    return x1_new, ldj_diff


def affine_coupling_pallas(x, log_det_J, weights, biases, mask_config,
                           reverse=False, packed=None,
                           compute_dtype=jnp.bfloat16):
    """Module-equivalent forward: even/odd split -> kernel -> interleave merge.

    For a stacked flow, pack_params once per layer and chain
    affine_coupling_blocked on de-interleaved activations so the strided
    gather/scatter (two extra HBM passes per layer) happens only once at
    model ingress/egress.
    """
    if packed is None:
        packed = pack_params(weights, biases, compute_dtype)
    B, D = x.shape
    assert D % 2 == 0
    even, odd = x[:, 0::2], x[:, 1::2]
    x1, x2 = (odd, even) if mask_config == 1 else (even, odd)

    x1_new, ldj_diff = affine_coupling_blocked(x1, x2, packed, reverse)

    if mask_config == 1:
        merged = jnp.stack([x2, x1_new], axis=2).reshape(B, D)
    else:
        merged = jnp.stack([x1_new, x2], axis=2).reshape(B, D)
    return merged, log_det_J + ldj_diff


def init_params(key, in_out_dim, mid_dim, hidden):
    """Deterministic init mimicking nn.Linear default (uniform +-1/sqrt(fan_in))."""
    half = in_out_dim // 2
    dims = [half] + [mid_dim] * (hidden + 1) + [in_out_dim]
    ws, bs = [], []
    for i in range(len(dims) - 1):
        fan_in, fan_out = dims[i], dims[i + 1]
        key, k1, k2 = jax.random.split(key, 3)
        bound = 1.0 / float(fan_in) ** 0.5
        ws.append(jax.random.uniform(k1, (fan_in, fan_out), jnp.float32, -bound, bound))
        bs.append(jax.random.uniform(k2, (fan_out,), jnp.float32, -bound, bound))
    return ws, bs


def affine_coupling_reference(x, log_det_J, ws, bs, mask_config, reverse=False):
    """Pure-JAX f32 reference matching the PyTorch module."""
    B, D = x.shape
    even, odd = x[:, 0::2], x[:, 1::2]
    x1, x2 = (odd, even) if mask_config == 1 else (even, odd)
    h = x2
    n = len(ws)
    for i in range(n):
        h = h @ ws[i] + bs[i]
        if i < n - 1:
            h = jnp.where(h > 0, h, LEAKY_SLOPE * h)
    s_log, t = h[:, 0::2], h[:, 1::2]
    s = jax.nn.sigmoid(s_log + SIGMOID_BIAS)
    ldj = jnp.sum(jnp.log(jnp.abs(s)))
    x1n = s * x1 + t if not reverse else (x1 - t) / s
    if mask_config == 1:
        merged = jnp.stack([x2, x1n], axis=2).reshape(B, D)
    else:
        merged = jnp.stack([x1n, x2], axis=2).reshape(B, D)
    return merged, log_det_J + ldj


if __name__ == "__main__":
    B, in_out_dim, mid_dim, hidden, mask_config = 8, 16, 32, 2, 1

    key = jax.random.PRNGKey(0)
    kx, kp = jax.random.split(key)
    x = jax.random.normal(kx, (B, in_out_dim), jnp.float32)
    ws, bs = init_params(kp, in_out_dim, mid_dim, hidden)
    log_det_J = jnp.float32(0.0)

    # One-time packing (perm + pad + cast hoisted out of the per-call path).
    packed_f32 = pack_params(ws, bs, compute_dtype=jnp.float32)
    packed_bf16 = pack_params(ws, bs, compute_dtype=jnp.bfloat16)

    ref_out, ref_ldj = affine_coupling_reference(x, log_det_J, ws, bs, mask_config)
    ref_out_r, ref_ldj_r = affine_coupling_reference(
        x, log_det_J, ws, bs, mask_config, reverse=True)

    # f32 compute path: tight check (forward + reverse).
    out, ldj = affine_coupling_pallas(x, log_det_J, ws, bs, mask_config,
                                      reverse=False, packed=packed_f32)
    out, ldj = jax.block_until_ready((out, ldj))
    assert jnp.allclose(out, ref_out, atol=1e-5, rtol=1e-5), "forward output mismatch"
    assert jnp.allclose(ldj, ref_ldj, atol=1e-5, rtol=1e-5), "forward log_det_J mismatch"

    out_r, ldj_r = affine_coupling_pallas(x, log_det_J, ws, bs, mask_config,
                                          reverse=True, packed=packed_f32)
    out_r, ldj_r = jax.block_until_ready((out_r, ldj_r))
    assert jnp.allclose(out_r, ref_out_r, atol=1e-5, rtol=1e-5), "reverse output mismatch"
    assert jnp.allclose(ldj_r, ref_ldj_r, atol=1e-5, rtol=1e-5), "reverse log_det_J mismatch"

    # bf16 MXU path (production compute dtype, bf16 x2 DMA): loose check.
    out_b, ldj_b = affine_coupling_pallas(x, log_det_J, ws, bs, mask_config,
                                          reverse=False, packed=packed_bf16)
    out_b, ldj_b = jax.block_until_ready((out_b, ldj_b))
    assert jnp.allclose(out_b, ref_out, atol=1.5e-1, rtol=1.5e-1), "bf16 output mismatch"
    assert jnp.allclose(ldj_b, ref_ldj, atol=5e-1, rtol=1e-1), "bf16 log_det_J mismatch"

    print("KERNEL_OK")
</pallas_src>

<mosaic_0001>
module attributes {stable_mosaic.version = 11 : i64} {
  func.func @_affine_coupling_kernel(%arg0: i32, %arg1: memref<8x8xf32, #tpu.memory_space<vmem>>, %arg2: memref<8x8xf32, #tpu.memory_space<vmem>>, %arg3: memref<128x128xf32, #tpu.memory_space<vmem>>, %arg4: memref<1x128xf32, #tpu.memory_space<vmem>>, %arg5: memref<128x128xf32, #tpu.memory_space<vmem>>, %arg6: memref<1x128xf32, #tpu.memory_space<vmem>>, %arg7: memref<128x128xf32, #tpu.memory_space<vmem>>, %arg8: memref<1x128xf32, #tpu.memory_space<vmem>>, %arg9: memref<128x256xf32, #tpu.memory_space<vmem>>, %arg10: memref<1x256xf32, #tpu.memory_space<vmem>>, %arg11: memref<8x8xf32, #tpu.memory_space<vmem>>, %arg12: memref<1x8x128xf32, #tpu.memory_space<vmem>>) attributes {dimension_semantics = [#tpu.dimension_semantics<parallel>], iteration_bounds = array<i64: 1>, scalar_prefetch = 0 : i64, scratch_operands = 0 : i64, tpu.core_type = #tpu.core_type<tc>, window_params = [{transform_indices = @transform_0, window_bounds = array<i64: 8, 8>}, {transform_indices = @transform_1, window_bounds = array<i64: 8, 8>}, {pipeline_mode = #tpu.pipeline_mode<synchronous>, transform_indices = @transform_2, window_bounds = array<i64: 128, 128>}, {pipeline_mode = #tpu.pipeline_mode<synchronous>, transform_indices = @transform_3, window_bounds = array<i64: 1, 128>}, {pipeline_mode = #tpu.pipeline_mode<synchronous>, transform_indices = @transform_4, window_bounds = array<i64: 128, 128>}, {pipeline_mode = #tpu.pipeline_mode<synchronous>, transform_indices = @transform_5, window_bounds = array<i64: 1, 128>}, {pipeline_mode = #tpu.pipeline_mode<synchronous>, transform_indices = @transform_6, window_bounds = array<i64: 128, 128>}, {pipeline_mode = #tpu.pipeline_mode<synchronous>, transform_indices = @transform_7, window_bounds = array<i64: 1, 128>}, {pipeline_mode = #tpu.pipeline_mode<synchronous>, transform_indices = @transform_8, window_bounds = array<i64: 128, 256>}, {pipeline_mode = #tpu.pipeline_mode<synchronous>, transform_indices = @transform_9, window_bounds = array<i64: 1, 256>}, {transform_indices = @transform_10, window_bounds = array<i64: 8, 8>}, {transform_indices = @transform_11, window_bounds = array<i64: 1, 8, 128>}]} {
    %c0 = arith.constant 0 : index
    %c0_0 = arith.constant 0 : index
    %0 = vector.load %arg2[%c0, %c0_0] : memref<8x8xf32, #tpu.memory_space<vmem>>, vector<8x8xf32>
    %cst = arith.constant 0.000000e+00 : f32
    %1 = vector.broadcast %cst : f32 to vector<8x120xf32>
    %2 = tpu.concatenate %0, %1 in 1 : vector<8x8xf32>, vector<8x120xf32> -> vector<8x128xf32>
    %c0_1 = arith.constant 0 : index
    %c0_2 = arith.constant 0 : index
    %3 = vector.load %arg3[%c0_1, %c0_2] : memref<128x128xf32, #tpu.memory_space<vmem>>, vector<128x128xf32>
    %c0_3 = arith.constant 0 : index
    %c0_4 = arith.constant 0 : index
    %4 = vector.load %arg4[%c0_3, %c0_4] : memref<1x128xf32, #tpu.memory_space<vmem>>, vector<1x128xf32>
    %cst_5 = arith.constant dense<0.000000e+00> : vector<8x128xf32>
    %5 = tpu.matmul %2, %3, %cst_5 {dimension_numbers = #tpu.dot_dimension_numbers<[1], [0], [0], [1], [0, 0, 1, 1], [], []>} : vector<8x128xf32>, vector<128x128xf32>, vector<8x128xf32> -> vector<8x128xf32>
    %6 = vector.broadcast %4 : vector<1x128xf32> to vector<8x128xf32>
    %7 = arith.addf %5, %6 : vector<8x128xf32>
    %cst_6 = arith.constant 0.000000e+00 : f32
    %8 = vector.broadcast %cst_6 : f32 to vector<8x128xf32>
    %9 = arith.cmpf ogt, %7, %8 : vector<8x128xf32>
    %cst_7 = arith.constant 0.00999999977 : f32
    %10 = vector.broadcast %cst_7 : f32 to vector<8x128xf32>
    %11 = arith.mulf %10, %7 : vector<8x128xf32>
    %12 = arith.select %9, %7, %11 : vector<8x128xi1>, vector<8x128xf32>
    %c0_8 = arith.constant 0 : index
    %c0_9 = arith.constant 0 : index
    %13 = vector.load %arg5[%c0_8, %c0_9] : memref<128x128xf32, #tpu.memory_space<vmem>>, vector<128x128xf32>
    %c0_10 = arith.constant 0 : index
    %c0_11 = arith.constant 0 : index
    %14 = vector.load %arg6[%c0_10, %c0_11] : memref<1x128xf32, #tpu.memory_space<vmem>>, vector<1x128xf32>
    %cst_12 = arith.constant dense<0.000000e+00> : vector<8x128xf32>
    %15 = tpu.matmul %12, %13, %cst_12 {dimension_numbers = #tpu.dot_dimension_numbers<[1], [0], [0], [1], [0, 0, 1, 1], [], []>} : vector<8x128xf32>, vector<128x128xf32>, vector<8x128xf32> -> vector<8x128xf32>
    %16 = vector.broadcast %14 : vector<1x128xf32> to vector<8x128xf32>
    %17 = arith.addf %15, %16 : vector<8x128xf32>
    %cst_13 = arith.constant 0.000000e+00 : f32
    %18 = vector.broadcast %cst_13 : f32 to vector<8x128xf32>
    %19 = arith.cmpf ogt, %17, %18 : vector<8x128xf32>
    %cst_14 = arith.constant 0.00999999977 : f32
    %20 = vector.broadcast %cst_14 : f32 to vector<8x128xf32>
    %21 = arith.mulf %20, %17 : vector<8x128xf32>
    %22 = arith.select %19, %17, %21 : vector<8x128xi1>, vector<8x128xf32>
    %c0_15 = arith.constant 0 : index
    %c0_16 = arith.constant 0 : index
    %23 = vector.load %arg7[%c0_15, %c0_16] : memref<128x128xf32, #tpu.memory_space<vmem>>, vector<128x128xf32>
    %c0_17 = arith.constant 0 : index
    %c0_18 = arith.constant 0 : index
    %24 = vector.load %arg8[%c0_17, %c0_18] : memref<1x128xf32, #tpu.memory_space<vmem>>, vector<1x128xf32>
    %cst_19 = arith.constant dense<0.000000e+00> : vector<8x128xf32>
    %25 = tpu.matmul %22, %23, %cst_19 {dimension_numbers = #tpu.dot_dimension_numbers<[1], [0], [0], [1], [0, 0, 1, 1], [], []>} : vector<8x128xf32>, vector<128x128xf32>, vector<8x128xf32> -> vector<8x128xf32>
    %26 = vector.broadcast %24 : vector<1x128xf32> to vector<8x128xf32>
    %27 = arith.addf %25, %26 : vector<8x128xf32>
    %cst_20 = arith.constant 0.000000e+00 : f32
    %28 = vector.broadcast %cst_20 : f32 to vector<8x128xf32>
    %29 = arith.cmpf ogt, %27, %28 : vector<8x128xf32>
    %cst_21 = arith.constant 0.00999999977 : f32
    %30 = vector.broadcast %cst_21 : f32 to vector<8x128xf32>
    %31 = arith.mulf %30, %27 : vector<8x128xf32>
    %32 = arith.select %29, %27, %31 : vector<8x128xi1>, vector<8x128xf32>
    %c0_22 = arith.constant 0 : index
    %c0_23 = arith.constant 0 : index
    %33 = vector.load %arg9[%c0_22, %c0_23] : memref<128x256xf32, #tpu.memory_space<vmem>>, vector<128x256xf32>
    %c0_24 = arith.constant 0 : index
    %c0_25 = arith.constant 0 : index
    %34 = vector.load %arg10[%c0_24, %c0_25] : memref<1x256xf32, #tpu.memory_space<vmem>>, vector<1x256xf32>
    %cst_26 = arith.constant dense<0.000000e+00> : vector<8x256xf32>
    %35 = tpu.matmul %32, %33, %cst_26 {dimension_numbers = #tpu.dot_dimension_numbers<[1], [0], [0], [1], [0, 0, 1, 1], [], []>} : vector<8x128xf32>, vector<128x256xf32>, vector<8x256xf32> -> vector<8x256xf32>
    %36 = vector.broadcast %34 : vector<1x256xf32> to vector<8x256xf32>
    %37 = arith.addf %35, %36 : vector<8x256xf32>
    %38 = vector.extract_strided_slice %37 {offsets = [0, 0], sizes = [8, 8], strides = [1, 1]} : vector<8x256xf32> to vector<8x8xf32>
    %39 = vector.extract_strided_slice %37 {offsets = [0, 128], sizes = [8, 8], strides = [1, 1]} : vector<8x256xf32> to vector<8x8xf32>
    %cst_27 = arith.constant 2.000000e+00 : f32
    %40 = vector.broadcast %cst_27 : f32 to vector<8x8xf32>
    %41 = arith.addf %38, %40 : vector<8x8xf32>
    %cst_28 = arith.constant 0.000000e+00 : f32
    %42 = vector.broadcast %cst_28 : f32 to vector<8x8xf32>
    %43 = arith.subf %42, %41 : vector<8x8xf32>
    %cst_29 = arith.constant 0.000000e+00 : f32
    %44 = vector.broadcast %cst_29 : f32 to vector<8x8xf32>
    %45 = arith.maximumf %43, %44 : vector<8x8xf32>
    %46 = math.absf %41 : vector<8x8xf32>
    %cst_30 = arith.constant 0.000000e+00 : f32
    %47 = vector.broadcast %cst_30 : f32 to vector<8x8xf32>
    %48 = arith.subf %47, %46 : vector<8x8xf32>
    %49 = math.exp %48 : vector<8x8xf32>
    %50 = math.log1p %49 : vector<8x8xf32>
    %51 = arith.addf %45, %50 : vector<8x8xf32>
    %cst_31 = arith.constant 0.000000e+00 : f32
    %52 = vector.broadcast %cst_31 : f32 to vector<8x8xf32>
    %53 = arith.subf %52, %51 : vector<8x8xf32>
    %54 = vector.shape_cast %53 : vector<8x8xf32> to vector<1x8x8xf32>
    %cst_32 = arith.constant dense<0.000000e+00> : vector<1xf32>
    %55 = vector.multi_reduction <add>, %54, %cst_32 [1, 2] : vector<1x8x8xf32> to vector<1xf32>
    %56 = vector.shape_cast %55 : vector<1xf32> to vector<1x1x1xf32>
    %57 = vector.extract %56[0, 0, 0] : f32 from vector<1x1x1xf32>
    %58 = vector.broadcast %57 : f32 to vector<1x8x128xf32>
    %c0_33 = arith.constant 0 : index
    %c0_34 = arith.constant 0 : index
    %c0_35 = arith.constant 0 : index
    %59 = vector.load %arg12[%c0_33, %c0_34, %c0_35] : memref<1x8x128xf32, #tpu.memory_space<vmem>>, vector<1x8x128xf32>
    tpu.vector_store %arg12[%c0_33, %c0_34, %c0_35], %58 {strides = array<i32>} : memref<1x8x128xf32, #tpu.memory_space<vmem>>, vector<1x8x128xf32>,
    %c0_36 = arith.constant 0 : index
    %c0_37 = arith.constant 0 : index
    %60 = vector.load %arg1[%c0_36, %c0_37] : memref<8x8xf32, #tpu.memory_space<vmem>>, vector<8x8xf32>
    %61 = math.exp %53 : vector<8x8xf32>
    %62 = arith.mulf %61, %60 : vector<8x8xf32>
    %63 = arith.addf %62, %39 : vector<8x8xf32>
    %c0_38 = arith.constant 0 : index
    %c0_39 = arith.constant 0 : index
    %64 = vector.load %arg11[%c0_38, %c0_39] : memref<8x8xf32, #tpu.memory_space<vmem>>, vector<8x8xf32>
    tpu.vector_store %arg11[%c0_38, %c0_39], %63 {strides = array<i32>} : memref<8x8xf32, #tpu.memory_space<vmem>>, vector<8x8xf32>,
    return
  }
  func.func @transform_0(%arg0: i32) -> (i32, i32) {
    %c0_i32 = arith.constant 0 : i32
    %c0_i32_0 = arith.constant 0 : i32
    return %arg0, %c0_i32 : i32, i32
  }
  func.func @transform_1(%arg0: i32) -> (i32, i32) {
    %c0_i32 = arith.constant 0 : i32
    %c0_i32_0 = arith.constant 0 : i32
    return %arg0, %c0_i32 : i32, i32
  }
  func.func @transform_2(%arg0: i32) -> (i32, i32) {
    %c0_i32 = arith.constant 0 : i32
    %c0_i32_0 = arith.constant 0 : i32
    %c0_i32_1 = arith.constant 0 : i32
    return %c0_i32, %c0_i32_0 : i32, i32
  }
  func.func @transform_3(%arg0: i32) -> (i32, i32) {
    %c0_i32 = arith.constant 0 : i32
    %c0_i32_0 = arith.constant 0 : i32
    %c0_i32_1 = arith.constant 0 : i32
    return %c0_i32, %c0_i32_0 : i32, i32
  }
  func.func @transform_4(%arg0: i32) -> (i32, i32) {
    %c0_i32 = arith.constant 0 : i32
    %c0_i32_0 = arith.constant 0 : i32
    %c0_i32_1 = arith.constant 0 : i32
    return %c0_i32, %c0_i32_0 : i32, i32
  }
  func.func @transform_5(%arg0: i32) -> (i32, i32) {
    %c0_i32 = arith.constant 0 : i32
    %c0_i32_0 = arith.constant 0 : i32
    %c0_i32_1 = arith.constant 0 : i32
    return %c0_i32, %c0_i32_0 : i32, i32
  }
  func.func @transform_6(%arg0: i32) -> (i32, i32) {
    %c0_i32 = arith.constant 0 : i32
    %c0_i32_0 = arith.constant 0 : i32
    %c0_i32_1 = arith.constant 0 : i32
    return %c0_i32, %c0_i32_0 : i32, i32
  }
  func.func @transform_7(%arg0: i32) -> (i32, i32) {
    %c0_i32 = arith.constant 0 : i32
    %c0_i32_0 = arith.constant 0 : i32
    %c0_i32_1 = arith.constant 0 : i32
    return %c0_i32, %c0_i32_0 : i32, i32
  }
  func.func @transform_8(%arg0: i32) -> (i32, i32) {
    %c0_i32 = arith.constant 0 : i32
    %c0_i32_0 = arith.constant 0 : i32
    %c0_i32_1 = arith.constant 0 : i32
    return %c0_i32, %c0_i32_0 : i32, i32
  }
  func.func @transform_9(%arg0: i32) -> (i32, i32) {
    %c0_i32 = arith.constant 0 : i32
    %c0_i32_0 = arith.constant 0 : i32
    %c0_i32_1 = arith.constant 0 : i32
    return %c0_i32, %c0_i32_0 : i32, i32
  }
  func.func @transform_10(%arg0: i32) -> (i32, i32) {
    %c0_i32 = arith.constant 0 : i32
    %c0_i32_0 = arith.constant 0 : i32
    return %arg0, %c0_i32 : i32, i32
  }
  func.func @transform_11(%arg0: i32) -> (i32, i32, i32) {
    %c0_i32 = arith.constant 0 : i32
    %c0_i32_0 = arith.constant 0 : i32
    %c0_i32_1 = arith.constant 0 : i32
    return %arg0, %c0_i32, %c0_i32_0 : i32, i32, i32
  }
}

module attributes {stable_mosaic.version = 11 : i64} {
  func.func @_affine_coupling_kernel(%arg0: i32, %arg1: memref<8x8xf32, #tpu.memory_space<vmem>>, %arg2: memref<8x8xf32, #tpu.memory_space<vmem>>, %arg3: memref<128x128xf32, #tpu.memory_space<vmem>>, %arg4: memref<1x128xf32, #tpu.memory_space<vmem>>, %arg5: memref<128x128xf32, #tpu.memory_space<vmem>>, %arg6: memref<1x128xf32, #tpu.memory_space<vmem>>, %arg7: memref<128x128xf32, #tpu.memory_space<vmem>>, %arg8: memref<1x128xf32, #tpu.memory_space<vmem>>, %arg9: memref<128x256xf32, #tpu.memory_space<vmem>>, %arg10: memref<1x256xf32, #tpu.memory_space<vmem>>, %arg11: memref<8x8xf32, #tpu.memory_space<vmem>>, %arg12: memref<1x8x128xf32, #tpu.memory_space<vmem>>) attributes {dimension_semantics = [#tpu.dimension_semantics<parallel>], iteration_bounds = array<i64: 1>, scalar_prefetch = 0 : i64, scratch_operands = 0 : i64, tpu.core_type = #tpu.core_type<tc>, window_params = [{transform_indices = @transform_0, window_bounds = array<i64: 8, 8>}, {transform_indices = @transform_1, window_bounds = array<i64: 8, 8>}, {pipeline_mode = #tpu.pipeline_mode<synchronous>, transform_indices = @transform_2, window_bounds = array<i64: 128, 128>}, {pipeline_mode = #tpu.pipeline_mode<synchronous>, transform_indices = @transform_3, window_bounds = array<i64: 1, 128>}, {pipeline_mode = #tpu.pipeline_mode<synchronous>, transform_indices = @transform_4, window_bounds = array<i64: 128, 128>}, {pipeline_mode = #tpu.pipeline_mode<synchronous>, transform_indices = @transform_5, window_bounds = array<i64: 1, 128>}, {pipeline_mode = #tpu.pipeline_mode<synchronous>, transform_indices = @transform_6, window_bounds = array<i64: 128, 128>}, {pipeline_mode = #tpu.pipeline_mode<synchronous>, transform_indices = @transform_7, window_bounds = array<i64: 1, 128>}, {pipeline_mode = #tpu.pipeline_mode<synchronous>, transform_indices = @transform_8, window_bounds = array<i64: 128, 256>}, {pipeline_mode = #tpu.pipeline_mode<synchronous>, transform_indices = @transform_9, window_bounds = array<i64: 1, 256>}, {transform_indices = @transform_10, window_bounds = array<i64: 8, 8>}, {transform_indices = @transform_11, window_bounds = array<i64: 1, 8, 128>}]} {
    %c0 = arith.constant 0 : index
    %c0_0 = arith.constant 0 : index
    %0 = vector.load %arg2[%c0, %c0_0] : memref<8x8xf32, #tpu.memory_space<vmem>>, vector<8x8xf32>
    %cst = arith.constant 0.000000e+00 : f32
    %1 = vector.broadcast %cst : f32 to vector<8x120xf32>
    %2 = tpu.concatenate %0, %1 in 1 : vector<8x8xf32>, vector<8x120xf32> -> vector<8x128xf32>
    %c0_1 = arith.constant 0 : index
    %c0_2 = arith.constant 0 : index
    %3 = vector.load %arg3[%c0_1, %c0_2] : memref<128x128xf32, #tpu.memory_space<vmem>>, vector<128x128xf32>
    %c0_3 = arith.constant 0 : index
    %c0_4 = arith.constant 0 : index
    %4 = vector.load %arg4[%c0_3, %c0_4] : memref<1x128xf32, #tpu.memory_space<vmem>>, vector<1x128xf32>
    %cst_5 = arith.constant dense<0.000000e+00> : vector<8x128xf32>
    %5 = tpu.matmul %2, %3, %cst_5 {dimension_numbers = #tpu.dot_dimension_numbers<[1], [0], [0], [1], [0, 0, 1, 1], [], []>} : vector<8x128xf32>, vector<128x128xf32>, vector<8x128xf32> -> vector<8x128xf32>
    %6 = vector.broadcast %4 : vector<1x128xf32> to vector<8x128xf32>
    %7 = arith.addf %5, %6 : vector<8x128xf32>
    %cst_6 = arith.constant 0.000000e+00 : f32
    %8 = vector.broadcast %cst_6 : f32 to vector<8x128xf32>
    %9 = arith.cmpf ogt, %7, %8 : vector<8x128xf32>
    %cst_7 = arith.constant 0.00999999977 : f32
    %10 = vector.broadcast %cst_7 : f32 to vector<8x128xf32>
    %11 = arith.mulf %10, %7 : vector<8x128xf32>
    %12 = arith.select %9, %7, %11 : vector<8x128xi1>, vector<8x128xf32>
    %c0_8 = arith.constant 0 : index
    %c0_9 = arith.constant 0 : index
    %13 = vector.load %arg5[%c0_8, %c0_9] : memref<128x128xf32, #tpu.memory_space<vmem>>, vector<128x128xf32>
    %c0_10 = arith.constant 0 : index
    %c0_11 = arith.constant 0 : index
    %14 = vector.load %arg6[%c0_10, %c0_11] : memref<1x128xf32, #tpu.memory_space<vmem>>, vector<1x128xf32>
    %cst_12 = arith.constant dense<0.000000e+00> : vector<8x128xf32>
    %15 = tpu.matmul %12, %13, %cst_12 {dimension_numbers = #tpu.dot_dimension_numbers<[1], [0], [0], [1], [0, 0, 1, 1], [], []>} : vector<8x128xf32>, vector<128x128xf32>, vector<8x128xf32> -> vector<8x128xf32>
    %16 = vector.broadcast %14 : vector<1x128xf32> to vector<8x128xf32>
    %17 = arith.addf %15, %16 : vector<8x128xf32>
    %cst_13 = arith.constant 0.000000e+00 : f32
    %18 = vector.broadcast %cst_13 : f32 to vector<8x128xf32>
    %19 = arith.cmpf ogt, %17, %18 : vector<8x128xf32>
    %cst_14 = arith.constant 0.00999999977 : f32
    %20 = vector.broadcast %cst_14 : f32 to vector<8x128xf32>
    %21 = arith.mulf %20, %17 : vector<8x128xf32>
    %22 = arith.select %19, %17, %21 : vector<8x128xi1>, vector<8x128xf32>
    %c0_15 = arith.constant 0 : index
    %c0_16 = arith.constant 0 : index
    %23 = vector.load %arg7[%c0_15, %c0_16] : memref<128x128xf32, #tpu.memory_space<vmem>>, vector<128x128xf32>
    %c0_17 = arith.constant 0 : index
    %c0_18 = arith.constant 0 : index
    %24 = vector.load %arg8[%c0_17, %c0_18] : memref<1x128xf32, #tpu.memory_space<vmem>>, vector<1x128xf32>
    %cst_19 = arith.constant dense<0.000000e+00> : vector<8x128xf32>
    %25 = tpu.matmul %22, %23, %cst_19 {dimension_numbers = #tpu.dot_dimension_numbers<[1], [0], [0], [1], [0, 0, 1, 1], [], []>} : vector<8x128xf32>, vector<128x128xf32>, vector<8x128xf32> -> vector<8x128xf32>
    %26 = vector.broadcast %24 : vector<1x128xf32> to vector<8x128xf32>
    %27 = arith.addf %25, %26 : vector<8x128xf32>
    %cst_20 = arith.constant 0.000000e+00 : f32
    %28 = vector.broadcast %cst_20 : f32 to vector<8x128xf32>
    %29 = arith.cmpf ogt, %27, %28 : vector<8x128xf32>
    %cst_21 = arith.constant 0.00999999977 : f32
    %30 = vector.broadcast %cst_21 : f32 to vector<8x128xf32>
    %31 = arith.mulf %30, %27 : vector<8x128xf32>
    %32 = arith.select %29, %27, %31 : vector<8x128xi1>, vector<8x128xf32>
    %c0_22 = arith.constant 0 : index
    %c0_23 = arith.constant 0 : index
    %33 = vector.load %arg9[%c0_22, %c0_23] : memref<128x256xf32, #tpu.memory_space<vmem>>, vector<128x256xf32>
    %c0_24 = arith.constant 0 : index
    %c0_25 = arith.constant 0 : index
    %34 = vector.load %arg10[%c0_24, %c0_25] : memref<1x256xf32, #tpu.memory_space<vmem>>, vector<1x256xf32>
    %cst_26 = arith.constant dense<0.000000e+00> : vector<8x256xf32>
    %35 = tpu.matmul %32, %33, %cst_26 {dimension_numbers = #tpu.dot_dimension_numbers<[1], [0], [0], [1], [0, 0, 1, 1], [], []>} : vector<8x128xf32>, vector<128x256xf32>, vector<8x256xf32> -> vector<8x256xf32>
    %36 = vector.broadcast %34 : vector<1x256xf32> to vector<8x256xf32>
    %37 = arith.addf %35, %36 : vector<8x256xf32>
    %38 = vector.extract_strided_slice %37 {offsets = [0, 0], sizes = [8, 8], strides = [1, 1]} : vector<8x256xf32> to vector<8x8xf32>
    %39 = vector.extract_strided_slice %37 {offsets = [0, 128], sizes = [8, 8], strides = [1, 1]} : vector<8x256xf32> to vector<8x8xf32>
    %cst_27 = arith.constant 2.000000e+00 : f32
    %40 = vector.broadcast %cst_27 : f32 to vector<8x8xf32>
    %41 = arith.addf %38, %40 : vector<8x8xf32>
    %cst_28 = arith.constant 0.000000e+00 : f32
    %42 = vector.broadcast %cst_28 : f32 to vector<8x8xf32>
    %43 = arith.subf %42, %41 : vector<8x8xf32>
    %cst_29 = arith.constant 0.000000e+00 : f32
    %44 = vector.broadcast %cst_29 : f32 to vector<8x8xf32>
    %45 = arith.maximumf %43, %44 : vector<8x8xf32>
    %46 = math.absf %41 : vector<8x8xf32>
    %cst_30 = arith.constant 0.000000e+00 : f32
    %47 = vector.broadcast %cst_30 : f32 to vector<8x8xf32>
    %48 = arith.subf %47, %46 : vector<8x8xf32>
    %49 = math.exp %48 : vector<8x8xf32>
    %50 = math.log1p %49 : vector<8x8xf32>
    %51 = arith.addf %45, %50 : vector<8x8xf32>
    %cst_31 = arith.constant 0.000000e+00 : f32
    %52 = vector.broadcast %cst_31 : f32 to vector<8x8xf32>
    %53 = arith.subf %52, %51 : vector<8x8xf32>
    %54 = vector.shape_cast %53 : vector<8x8xf32> to vector<1x8x8xf32>
    %cst_32 = arith.constant dense<0.000000e+00> : vector<1xf32>
    %55 = vector.multi_reduction <add>, %54, %cst_32 [1, 2] : vector<1x8x8xf32> to vector<1xf32>
    %56 = vector.shape_cast %55 : vector<1xf32> to vector<1x1x1xf32>
    %57 = vector.extract %56[0, 0, 0] : f32 from vector<1x1x1xf32>
    %58 = vector.broadcast %57 : f32 to vector<1x8x128xf32>
    %c0_33 = arith.constant 0 : index
    %c0_34 = arith.constant 0 : index
    %c0_35 = arith.constant 0 : index
    %59 = vector.load %arg12[%c0_33, %c0_34, %c0_35] : memref<1x8x128xf32, #tpu.memory_space<vmem>>, vector<1x8x128xf32>
    tpu.vector_store %arg12[%c0_33, %c0_34, %c0_35], %58 {strides = array<i32>} : memref<1x8x128xf32, #tpu.memory_space<vmem>>, vector<1x8x128xf32>,
    %c0_36 = arith.constant 0 : index
    %c0_37 = arith.constant 0 : index
    %60 = vector.load %arg1[%c0_36, %c0_37] : memref<8x8xf32, #tpu.memory_space<vmem>>, vector<8x8xf32>
    %61 = math.exp %53 : vector<8x8xf32>
    %62 = arith.mulf %61, %60 : vector<8x8xf32>
    %63 = arith.addf %62, %39 : vector<8x8xf32>
    %c0_38 = arith.constant 0 : index
    %c0_39 = arith.constant 0 : index
    %64 = vector.load %arg11[%c0_38, %c0_39] : memref<8x8xf32, #tpu.memory_space<vmem>>, vector<8x8xf32>
    tpu.vector_store %arg11[%c0_38, %c0_39], %63 {strides = array<i32>} : memref<8x8xf32, #tpu.memory_space<vmem>>, vector<8x8xf32>,
    return
  }
  func.func @transform_0(%arg0: i32) -> (i32, i32) {
    %c0_i32 = arith.constant 0 : i32
    %c0_i32_0 = arith.constant 0 : i32
    return %arg0, %c0_i32 : i32, i32
  }
  func.func @transform_1(%arg0: i32) -> (i32, i32) {
    %c0_i32 = arith.constant 0 : i32
    %c0_i32_0 = arith.constant 0 : i32
    return %arg0, %c0_i32 : i32, i32
  }
  func.func @transform_2(%arg0: i32) -> (i32, i32) {
    %c0_i32 = arith.constant 0 : i32
    %c0_i32_0 = arith.constant 0 : i32
    %c0_i32_1 = arith.constant 0 : i32
    return %c0_i32, %c0_i32_0 : i32, i32
  }
  func.func @transform_3(%arg0: i32) -> (i32, i32) {
    %c0_i32 = arith.constant 0 : i32
    %c0_i32_0 = arith.constant 0 : i32
    %c0_i32_1 = arith.constant 0 : i32
    return %c0_i32, %c0_i32_0 : i32, i32
  }
  func.func @transform_4(%arg0: i32) -> (i32, i32) {
    %c0_i32 = arith.constant 0 : i32
    %c0_i32_0 = arith.constant 0 : i32
    %c0_i32_1 = arith.constant 0 : i32
    return %c0_i32, %c0_i32_0 : i32, i32
  }
  func.func @transform_5(%arg0: i32) -> (i32, i32) {
    %c0_i32 = arith.constant 0 : i32
    %c0_i32_0 = arith.constant 0 : i32
    %c0_i32_1 = arith.constant 0 : i32
    return %c0_i32, %c0_i32_0 : i32, i32
  }
  func.func @transform_6(%arg0: i32) -> (i32, i32) {
    %c0_i32 = arith.constant 0 : i32
    %c0_i32_0 = arith.constant 0 : i32
    %c0_i32_1 = arith.constant 0 : i32
    return %c0_i32, %c0_i32_0 : i32, i32
  }
  func.func @transform_7(%arg0: i32) -> (i32, i32) {
    %c0_i32 = arith.constant 0 : i32
    %c0_i32_0 = arith.constant 0 : i32
    %c0_i32_1 = arith.constant 0 : i32
    return %c0_i32, %c0_i32_0 : i32, i32
  }
  func.func @transform_8(%arg0: i32) -> (i32, i32) {
    %c0_i32 = arith.constant 0 : i32
    %c0_i32_0 = arith.constant 0 : i32
    %c0_i32_1 = arith.constant 0 : i32
    return %c0_i32, %c0_i32_0 : i32, i32
  }
  func.func @transform_9(%arg0: i32) -> (i32, i32) {
    %c0_i32 = arith.constant 0 : i32
    %c0_i32_0 = arith.constant 0 : i32
    %c0_i32_1 = arith.constant 0 : i32
    return %c0_i32, %c0_i32_0 : i32, i32
  }
  func.func @transform_10(%arg0: i32) -> (i32, i32) {
    %c0_i32 = arith.constant 0 : i32
    %c0_i32_0 = arith.constant 0 : i32
    return %arg0, %c0_i32 : i32, i32
  }
  func.func @transform_11(%arg0: i32) -> (i32, i32, i32) {
    %c0_i32 = arith.constant 0 : i32
    %c0_i32_0 = arith.constant 0 : i32
    %c0_i32_1 = arith.constant 0 : i32
    return %arg0, %c0_i32, %c0_i32_0 : i32, i32, i32
  }
}

</mosaic_0001>

<llo_original>
// kernel: tpu_custom_call.1
$region0: #{tpu_custom_call.1}
  #allocation0 [shape = 'u32[]', space=smem, size = 0x4, offset = 0x4, fixed_abs, tag = 'smem constant byte address 0x4 - core index']
  #allocation1 [shape = 'u32[72,128]{1,0:T(1,128)}', space=vmem, size = 0x9000, scoped, tag = 'internal scratch']
  %s0 = inlined_call_operand.hbm [shape: f32[8,8], index: 0, kind: input, shape index: {}]
  %s1 = inlined_call_operand.hbm [shape: f32[8,8], index: 1, kind: input, shape index: {}]
  %s2 = inlined_call_operand.hbm [shape: f32[128,128], index: 2, kind: input, shape index: {}]
  %s3 = inlined_call_operand.vmem [shape: f32[1,128], index: 3, kind: input, shape index: {}]
  %s4 = inlined_call_operand.hbm [shape: f32[128,128], index: 4, kind: input, shape index: {}]
  %s5 = inlined_call_operand.vmem [shape: f32[1,128], index: 5, kind: input, shape index: {}]
  %s6 = inlined_call_operand.hbm [shape: f32[128,128], index: 6, kind: input, shape index: {}]
  %s7 = inlined_call_operand.vmem [shape: f32[1,128], index: 7, kind: input, shape index: {}]
  %s8 = inlined_call_operand.hbm [shape: f32[128,256], index: 8, kind: input, shape index: {}]
  %s9 = inlined_call_operand.vmem [shape: f32[1,256], index: 9, kind: input, shape index: {}]
  %s10 = inlined_call_operand.hbm [shape: f32[8,8], index: 10, kind: output, shape index: {0}]
  %s11 = inlined_call_operand.hbm [shape: f32[1,8,128], index: 11, kind: output, shape index: {1}]
  %12 = xla_tuple %s10, %s11
  %s13 = sld [smem:[#allocation0]]
  $region82: #{tpu_custom_call.1} parent=0
    _
  %s15 = ssub.s32 1, %s13
  %s16 = scalar_select 0, %s15, %s13
  $region1: #{tpu_custom_call.1} parent=0
    #allocation2 [shape = 'u8[4096]{0}', space=vmem, size = 0x1000, scoped, tag = 'input window, operand 0, single buffered']
    #allocation3 [shape = 's32[1]{0}', space=sflag, size = 0x4, scoped, tag = 'scoped memory for tpu_custom_call.1']
    #allocation4 [shape = 's32[1]{0}', space=sflag, size = 0x4, scoped, tag = 'scoped memory for tpu_custom_call.1']
    #allocation5 [shape = 'u8[4096]{0}', space=vmem, size = 0x1000, scoped, tag = 'input window, operand 1, single buffered']
    #allocation6 [shape = 's32[1]{0}', space=sflag, size = 0x4, scoped, tag = 'scoped memory for tpu_custom_call.1']
    #allocation7 [shape = 'u8[65536]{0}', space=vmem, size = 0x10000, scoped, tag = 'input window, operand 2, single buffered']
    #allocation8 [shape = 'u8[65536]{0}', space=vmem, size = 0x10000, scoped, tag = 'input window, operand 4, single buffered']
    #allocation9 [shape = 's32[1]{0}', space=sflag, size = 0x4, scoped, tag = 'scoped memory for tpu_custom_call.1']
    #allocation10 [shape = 'u8[65536]{0}', space=vmem, size = 0x10000, scoped, tag = 'input window, operand 6, single buffered']
    #allocation11 [shape = 'u8[131072]{0}', space=vmem, size = 0x20000, scoped, tag = 'input window, operand 8, single buffered']
    #allocation12 [shape = 's32[1]{0}', space=sflag, size = 0x4, scoped, tag = 'scoped memory for tpu_custom_call.1']
    #allocation13 [shape = 'u8[4096]{0}', space=vmem, size = 0x1000, scoped, tag = 'output window, operand 0, single buffered']
    #allocation14 [shape = 'u8[4096]{0}', space=vmem, size = 0x1000, scoped, tag = 'output window, operand 1, single buffered']
    #allocation15 [shape = 's32[1]{0}', space=sflag, size = 0x4, scoped, tag = 'scoped memory for tpu_custom_call.1']
    %17 = vsyncpa [#allocation3], 0
    %18 = vsyncpa [#allocation6], 0
    %19 = vsyncpa [#allocation9], 0
    %20 = vsyncpa [#allocation12], 0
    %21 = vsyncpa [#allocation4], 0
    %22 = vsyncpa [#allocation15], 0
    // Predicated region
    $region2: #{tpu_custom_call.1} parent=1 // pred_check
      _
    $region3: #{tpu_custom_call.1} parent=1 // pred_check_branch
      %24 = sbr.rel (0) target = $region5
    $region4: #{tpu_custom_call.1} parent=1 // pred_region
      %26 = vsyncadd [#allocation3], 0
      %s28 = sshll.u32 %s0, 4
      %s29 = int_to_ptr.hbm [resolvable:$true] %s28
      %s30 = sshll.u32 [#allocation2], 4
      %s31 = int_to_ptr.vmem [resolvable:$true] %s30
      %33 = dma.hbm_to_vmem [thread:$0]  %s29, 128, %s31, [#allocation3]
    $region5: #{tpu_custom_call.1} parent=1 // pred_fallthru
      _
    // Predicated region
    $region6: #{tpu_custom_call.1} parent=1 // pred_check
      _
    $region7: #{tpu_custom_call.1} parent=1 // pred_check_branch
      %35 = sbr.rel (0) target = $region9
    $region8: #{tpu_custom_call.1} parent=1 // pred_region
      %37 = vsyncadd [#allocation6], 0
      %s39 = sshll.u32 %s1, 4
      %s40 = int_to_ptr.hbm [resolvable:$true] %s39
      %s41 = sshll.u32 [#allocation5], 4
      %s42 = int_to_ptr.vmem [resolvable:$true] %s41
      %44 = dma.hbm_to_vmem [thread:$0]  %s40, 128, %s42, [#allocation6]
    $region9: #{tpu_custom_call.1} parent=1 // pred_fallthru
      _
    // Predicated region
    $region10: #{tpu_custom_call.1} parent=1 // pred_check
      _
    $region11: #{tpu_custom_call.1} parent=1 // pred_check_branch
      %46 = sbr.rel (0) target = $region13
    $region12: #{tpu_custom_call.1} parent=1 // pred_region
      %48 = vsyncadd [#allocation6], 0
      %s49 = sshll.u32 %s2, 4
      %s50 = int_to_ptr.hbm [resolvable:$true] %s49
      %s51 = sshll.u32 [#allocation7], 4
      %s52 = int_to_ptr.vmem [resolvable:$true] %s51
      %57 = dma.hbm_to_vmem [thread:$0]  %s50, 2048, %s52, [#allocation6], 128, 128, 8
    $region13: #{tpu_custom_call.1} parent=1 // pred_fallthru
      _
    // Predicated region
    $region14: #{tpu_custom_call.1} parent=1 // pred_check
      _
    $region15: #{tpu_custom_call.1} parent=1 // pred_check_branch
      %59 = sbr.rel (0) target = $region17
    $region16: #{tpu_custom_call.1} parent=1 // pred_region
      _
    $region17: #{tpu_custom_call.1} parent=1 // pred_fallthru
      _
    // Predicated region
    $region18: #{tpu_custom_call.1} parent=1 // pred_check
      _
    $region19: #{tpu_custom_call.1} parent=1 // pred_check_branch
      %61 = sbr.rel (0) target = $region21
    $region20: #{tpu_custom_call.1} parent=1 // pred_region
      %63 = vsyncadd [#allocation9], 0
      %s64 = sshll.u32 %s4, 4
      %s65 = int_to_ptr.hbm [resolvable:$true] %s64
      %s66 = sshll.u32 [#allocation8], 4
      %s67 = int_to_ptr.vmem [resolvable:$true] %s66
      %72 = dma.hbm_to_vmem [thread:$0]  %s65, 2048, %s67, [#allocation9], 128, 128, 8
    $region21: #{tpu_custom_call.1} parent=1 // pred_fallthru
      _
    // Predicated region
    $region22: #{tpu_custom_call.1} parent=1 // pred_check
      _
    $region23: #{tpu_custom_call.1} parent=1 // pred_check_branch
      %74 = sbr.rel (0) target = $region25
    $region24: #{tpu_custom_call.1} parent=1 // pred_region
      _
    $region25: #{tpu_custom_call.1} parent=1 // pred_fallthru
      _
    // Predicated region
    $region26: #{tpu_custom_call.1} parent=1 // pred_check
      _
    $region27: #{tpu_custom_call.1} parent=1 // pred_check_branch
      %76 = sbr.rel (0) target = $region29
    $region28: #{tpu_custom_call.1} parent=1 // pred_region
      %78 = vsyncadd [#allocation9], 0
      %s79 = sshll.u32 %s6, 4
      %s80 = int_to_ptr.hbm [resolvable:$true] %s79
      %s81 = sshll.u32 [#allocation10], 4
      %s82 = int_to_ptr.vmem [resolvable:$true] %s81
      %87 = dma.hbm_to_vmem [thread:$0]  %s80, 2048, %s82, [#allocation9], 128, 128, 8
    $region29: #{tpu_custom_call.1} parent=1 // pred_fallthru
      _
    // Predicated region
    $region30: #{tpu_custom_call.1} parent=1 // pred_check
      _
    $region31: #{tpu_custom_call.1} parent=1 // pred_check_branch
      %89 = sbr.rel (0) target = $region33
    $region32: #{tpu_custom_call.1} parent=1 // pred_region
      _
    $region33: #{tpu_custom_call.1} parent=1 // pred_fallthru
      _
    // Predicated region
    $region34: #{tpu_custom_call.1} parent=1 // pred_check
      _
    $region35: #{tpu_custom_call.1} parent=1 // pred_check_branch
      %91 = sbr.rel (0) target = $region37
    $region36: #{tpu_custom_call.1} parent=1 // pred_region
      %93 = vsyncadd [#allocation12], 0
      %s94 = sshll.u32 %s8, 4
      %s95 = int_to_ptr.hbm [resolvable:$true] %s94
      %s96 = sshll.u32 [#allocation11], 4
      %s97 = int_to_ptr.vmem [resolvable:$true] %s96
      %102 = dma.hbm_to_vmem [thread:$0]  %s95, 4096, %s97, [#allocation12], 256, 256, 16
    $region37: #{tpu_custom_call.1} parent=1 // pred_fallthru
      _
    // Predicated region
    $region38: #{tpu_custom_call.1} parent=1 // pred_check
      _
    $region39: #{tpu_custom_call.1} parent=1 // pred_check_branch
      %104 = sbr.rel (0) target = $region41
    $region40: #{tpu_custom_call.1} parent=1 // pred_region
      _
    $region41: #{tpu_custom_call.1} parent=1 // pred_fallthru
      _
    // Predicated region
    $region42: #{tpu_custom_call.1} parent=1 // pred_check
      _
    $region43: #{tpu_custom_call.1} parent=1 // pred_check_branch
      %106 = sbr.rel (0) target = $region45
    $region44: #{tpu_custom_call.1} parent=1 // pred_region
      %108 = dma.done [#allocation3], 128
    $region45: #{tpu_custom_call.1} parent=1 // pred_fallthru
      _
    // Predicated region
    $region46: #{tpu_custom_call.1} parent=1 // pred_check
      _
    $region47: #{tpu_custom_call.1} parent=1 // pred_check_branch
      %110 = sbr.rel (0) target = $region49
    $region48: #{tpu_custom_call.1} parent=1 // pred_region
      %112 = dma.done [#allocation6], 128
    $region49: #{tpu_custom_call.1} parent=1 // pred_fallthru
      _
    // Predicated region
    $region50: #{tpu_custom_call.1} parent=1 // pred_check
      _
    $region51: #{tpu_custom_call.1} parent=1 // pred_check_branch
      %114 = sbr.rel (0) target = $region53
    $region52: #{tpu_custom_call.1} parent=1 // pred_region
      %116 = dma.done [#allocation6], 2048
    $region53: #{tpu_custom_call.1} parent=1 // pred_fallthru
      _
    // Predicated region
    $region54: #{tpu_custom_call.1} parent=1 // pred_check
      _
    $region55: #{tpu_custom_call.1} parent=1 // pred_check_branch
      %118 = sbr.rel (0) target = $region57
    $region56: #{tpu_custom_call.1} parent=1 // pred_region
      %120 = dma.done [#allocation9], 2048
    $region57: #{tpu_custom_call.1} parent=1 // pred_fallthru
      _
    // Predicated region
    $region58: #{tpu_custom_call.1} parent=1 // pred_check
      _
    $region59: #{tpu_custom_call.1} parent=1 // pred_check_branch
      %122 = sbr.rel (0) target = $region61
    $region60: #{tpu_custom_call.1} parent=1 // pred_region
      %124 = dma.done [#allocation9], 2048
    $region61: #{tpu_custom_call.1} parent=1 // pred_fallthru
      _
    // Predicated region
    $region62: #{tpu_custom_call.1} parent=1 // pred_check
      _
    $region63: #{tpu_custom_call.1} parent=1 // pred_check_branch
      %126 = sbr.rel (0) target = $region65
    $region64: #{tpu_custom_call.1} parent=1 // pred_region
      %128 = dma.done [#allocation12], 4096
    $region65: #{tpu_custom_call.1} parent=1 // pred_fallthru
      _
    %v129 = vld [vmem:[#allocation5] sm:$0xff]
    %vm130 = vcmask 64512
    %v131 = vsel %vm130, %v129, 0.0
    %v132 = vld [vmem:[#allocation7] sm:$0xff]
    %v133 = vld [vmem:[#allocation7 + $0x8] sm:$0xff]
    %v134 = vld [vmem:[#allocation7 + $0x10] sm:$0xff]
    %v135 = vld [vmem:[#allocation7 + $0x18] sm:$0xff]
    %v136 = vld [vmem:[#allocation7 + $0x20] sm:$0xff]
    %v137 = vld [vmem:[#allocation7 + $0x28] sm:$0xff]
    %v138 = vld [vmem:[#allocation7 + $0x30] sm:$0xff]
    %v139 = vld [vmem:[#allocation7 + $0x38] sm:$0xff]
    %v140 = vld [vmem:[#allocation7 + $0x40] sm:$0xff]
    %v141 = vld [vmem:[#allocation7 + $0x48] sm:$0xff]
    %v142 = vld [vmem:[#allocation7 + $0x50] sm:$0xff]
    %v143 = vld [vmem:[#allocation7 + $0x58] sm:$0xff]
    %v144 = vld [vmem:[#allocation7 + $0x60] sm:$0xff]
    %v145 = vld [vmem:[#allocation7 + $0x68] sm:$0xff]
    %v146 = vld [vmem:[#allocation7 + $0x70] sm:$0xff]
    %v147 = vld [vmem:[#allocation7 + $0x78] sm:$0xff]
    %v148 = vld [vmem:[%s3] sm:$0x1]
    %v150 = vperm.slane %v148, 0
    %152 = vmatpush.msra.mxu0 %v147
    %153 = vmatpush.msra.mxu0 %v146
    %154 = vmatpush.msra.mxu0 %v145
    %155 = vmatpush.msra.mxu0 %v144
    %156 = vmatpush.msra.mxu0 %v143
    %157 = vmatpush.msra.mxu0 %v142
    %158 = vmatpush.msra.mxu0 %v141
    %159 = vmatpush.msra.mxu0 %v140
    %160 = vmatpush.msra.mxu0 %v139
    %161 = vmatpush.msra.mxu0 %v138
    %162 = vmatpush.msra.mxu0 %v137
    %163 = vmatpush.msra.mxu0 %v136
    %164 = vmatpush.msra.mxu0 %v135
    %165 = vmatpush.msra.mxu0 %v134
    %166 = vmatpush.msra.mxu0 %v133
    %167 = vmatpush.msra.mxu0 %v132
    %168 = vmatmul.f32.gmra.mxu0 %v131
    %v169 = vpop.f32.mrf.mxu0
    %v170 = vadd.f32 %v150, %v169
    %171 = vdwg.mxu0
    %vm172 = vcmp.gt.f32.partialorder %v170, 0.0
    %v173 = vmul.f32 %v170, 0.01
    %v174 = vsel %vm172, %v170, %v173
    %v175 = vld [vmem:[#allocation8] sm:$0xff]
    %v176 = vld [vmem:[#allocation8 + $0x8] sm:$0xff]
    %v177 = vld [vmem:[#allocation8 + $0x10] sm:$0xff]
    %v178 = vld [vmem:[#allocation8 + $0x18] sm:$0xff]
    %v179 = vld [vmem:[#allocation8 + $0x20] sm:$0xff]
    %v180 = vld [vmem:[#allocation8 + $0x28] sm:$0xff]
    %v181 = vld [vmem:[#allocation8 + $0x30] sm:$0xff]
    %v182 = vld [vmem:[#allocation8 + $0x38] sm:$0xff]
    %v183 = vld [vmem:[#allocation8 + $0x40] sm:$0xff]
    %v184 = vld [vmem:[#allocation8 + $0x48] sm:$0xff]
    %v185 = vld [vmem:[#allocation8 + $0x50] sm:$0xff]
    %v186 = vld [vmem:[#allocation8 + $0x58] sm:$0xff]
    %v187 = vld [vmem:[#allocation8 + $0x60] sm:$0xff]
    %v188 = vld [vmem:[#allocation8 + $0x68] sm:$0xff]
    %v189 = vld [vmem:[#allocation8 + $0x70] sm:$0xff]
    %v190 = vld [vmem:[#allocation8 + $0x78] sm:$0xff]
    %v191 = vld [vmem:[%s5] sm:$0x1]
    %v193 = vperm.slane %v191, 0
    %195 = vmatpush.msra.mxu0 %v190
    %196 = vmatpush.msra.mxu0 %v189
    %197 = vmatpush.msra.mxu0 %v188
    %198 = vmatpush.msra.mxu0 %v187
    %199 = vmatpush.msra.mxu0 %v186
    %200 = vmatpush.msra.mxu0 %v185
    %201 = vmatpush.msra.mxu0 %v184
    %202 = vmatpush.msra.mxu0 %v183
    %203 = vmatpush.msra.mxu0 %v182
    %204 = vmatpush.msra.mxu0 %v181
    %205 = vmatpush.msra.mxu0 %v180
    %206 = vmatpush.msra.mxu0 %v179
    %207 = vmatpush.msra.mxu0 %v178
    %208 = vmatpush.msra.mxu0 %v177
    %209 = vmatpush.msra.mxu0 %v176
    %210 = vmatpush.msra.mxu0 %v175
    %211 = vmatmul.f32.gmra.mxu0 %v174
    %v212 = vpop.f32.mrf.mxu0
    %v213 = vadd.f32 %v193, %v212
    %214 = vdwg.mxu0
    %vm215 = vcmp.gt.f32.partialorder %v213, 0.0
    %v216 = vmul.f32 %v213, 0.01
    %v217 = vsel %vm215, %v213, %v216
    %v218 = vld [vmem:[#allocation10] sm:$0xff]
    %v219 = vld [vmem:[#allocation10 + $0x8] sm:$0xff]
    %v220 = vld [vmem:[#allocation10 + $0x10] sm:$0xff]
    %v221 = vld [vmem:[#allocation10 + $0x18] sm:$0xff]
    %v222 = vld [vmem:[#allocation10 + $0x20] sm:$0xff]
    %v223 = vld [vmem:[#allocation10 + $0x28] sm:$0xff]
    %v224 = vld [vmem:[#allocation10 + $0x30] sm:$0xff]
    %v225 = vld [vmem:[#allocation10 + $0x38] sm:$0xff]
    %v226 = vld [vmem:[#allocation10 + $0x40] sm:$0xff]
    %v227 = vld [vmem:[#allocation10 + $0x48] sm:$0xff]
    %v228 = vld [vmem:[#allocation10 + $0x50] sm:$0xff]
    %v229 = vld [vmem:[#allocation10 + $0x58] sm:$0xff]
    %v230 = vld [vmem:[#allocation10 + $0x60] sm:$0xff]
    %v231 = vld [vmem:[#allocation10 + $0x68] sm:$0xff]
    %v232 = vld [vmem:[#allocation10 + $0x70] sm:$0xff]
    %v233 = vld [vmem:[#allocation10 + $0x78] sm:$0xff]
    %v234 = vld [vmem:[%s7] sm:$0x1]
    %v236 = vperm.slane %v234, 0
    %238 = vmatpush.msra.mxu0 %v233
    %239 = vmatpush.msra.mxu0 %v232
    %240 = vmatpush.msra.mxu0 %v231
    %241 = vmatpush.msra.mxu0 %v230
    %242 = vmatpush.msra.mxu0 %v229
    %243 = vmatpush.msra.mxu0 %v228
    %244 = vmatpush.msra.mxu0 %v227
    %245 = vmatpush.msra.mxu0 %v226
    %246 = vmatpush.msra.mxu0 %v225
    %247 = vmatpush.msra.mxu0 %v224
    %248 = vmatpush.msra.mxu0 %v223
    %249 = vmatpush.msra.mxu0 %v222
    %250 = vmatpush.msra.mxu0 %v221
    %251 = vmatpush.msra.mxu0 %v220
    %252 = vmatpush.msra.mxu0 %v219
    %253 = vmatpush.msra.mxu0 %v218
    %254 = vmatmul.f32.gmra.mxu0 %v217
    %v255 = vpop.f32.mrf.mxu0
    %v256 = vadd.f32 %v236, %v255
    %257 = vdwg.mxu0
    %vm258 = vcmp.gt.f32.partialorder %v256, 0.0
    %v259 = vmul.f32 %v256, 0.01
    %v260 = vsel %vm258, %v256, %v259
    %v261 = vld [vmem:[#allocation11] sm:$0xff]
    %v262 = vld [vmem:[#allocation11 + $0x8] sm:$0xff]
    %v263 = vld [vmem:[#allocation11 + $0x10] sm:$0xff]
    %v264 = vld [vmem:[#allocation11 + $0x18] sm:$0xff]
    %v265 = vld [vmem:[#allocation11 + $0x20] sm:$0xff]
    %v266 = vld [vmem:[#allocation11 + $0x28] sm:$0xff]
    %v267 = vld [vmem:[#allocation11 + $0x30] sm:$0xff]
    %v268 = vld [vmem:[#allocation11 + $0x38] sm:$0xff]
    %v269 = vld [vmem:[#allocation11 + $0x40] sm:$0xff]
    %v270 = vld [vmem:[#allocation11 + $0x48] sm:$0xff]
    %v271 = vld [vmem:[#allocation11 + $0x50] sm:$0xff]
    %v272 = vld [vmem:[#allocation11 + $0x58] sm:$0xff]
    %v273 = vld [vmem:[#allocation11 + $0x60] sm:$0xff]
    %v274 = vld [vmem:[#allocation11 + $0x68] sm:$0xff]
    %v275 = vld [vmem:[#allocation11 + $0x70] sm:$0xff]
    %v276 = vld [vmem:[#allocation11 + $0x78] sm:$0xff]
    %v277 = vld [vmem:[#allocation11 + $0x80] sm:$0xff]
    %v278 = vld [vmem:[#allocation11 + $0x88] sm:$0xff]
    %v279 = vld [vmem:[#allocation11 + $0x90] sm:$0xff]
    %v280 = vld [vmem:[#allocation11 + $0x98] sm:$0xff]
    %v281 = vld [vmem:[#allocation11 + $0xa0] sm:$0xff]
    %v282 = vld [vmem:[#allocation11 + $0xa8] sm:$0xff]
    %v283 = vld [vmem:[#allocation11 + $0xb0] sm:$0xff]
    %v284 = vld [vmem:[#allocation11 + $0xb8] sm:$0xff]
    %v285 = vld [vmem:[#allocation11 + $0xc0] sm:$0xff]
    %v286 = vld [vmem:[#allocation11 + $0xc8] sm:$0xff]
    %v287 = vld [vmem:[#allocation11 + $0xd0] sm:$0xff]
    %v288 = vld [vmem:[#allocation11 + $0xd8] sm:$0xff]
    %v289 = vld [vmem:[#allocation11 + $0xe0] sm:$0xff]
    %v290 = vld [vmem:[#allocation11 + $0xe8] sm:$0xff]
    %v291 = vld [vmem:[#allocation11 + $0xf0] sm:$0xff]
    %v292 = vld [vmem:[#allocation11 + $0xf8] sm:$0xff]
    %v293 = vld [vmem:[%s9] sm:$0x3]
    %v295 = vperm.slane %v293, 0
    %v296 = vperm.slane %v293, 1
    %299 = vmatpush.msra.mxu0 %v291
    %300 = vmatpush.msra.mxu0 %v289
    %301 = vmatpush.msra.mxu0 %v287
    %302 = vmatpush.msra.mxu0 %v285
    %303 = vmatpush.msra.mxu0 %v283
    %304 = vmatpush.msra.mxu0 %v281
    %305 = vmatpush.msra.mxu0 %v279
    %306 = vmatpush.msra.mxu0 %v277
    %307 = vmatpush.msra.mxu0 %v275
    %308 = vmatpush.msra.mxu0 %v273
    %309 = vmatpush.msra.mxu0 %v271
    %310 = vmatpush.msra.mxu0 %v269
    %311 = vmatpush.msra.mxu0 %v267
    %312 = vmatpush.msra.mxu0 %v265
    %313 = vmatpush.msra.mxu0 %v263
    %314 = vmatpush.msra.mxu0 %v261
    %315 = vmatmul.f32.gmra.mxu0 %v260
    %v316 = vpop.f32.mrf.mxu0
    %v317 = vadd.f32 %v295, %v316
    %318 = vdwg.mxu0
    %319 = vmatpush.msra.mxu0 %v292
    %320 = vmatpush.msra.mxu0 %v290
    %321 = vmatpush.msra.mxu0 %v288
    %322 = vmatpush.msra.mxu0 %v286
    %323 = vmatpush.msra.mxu0 %v284
    %324 = vmatpush.msra.mxu0 %v282
    %325 = vmatpush.msra.mxu0 %v280
    %326 = vmatpush.msra.mxu0 %v278
    %327 = vmatpush.msra.mxu0 %v276
    %328 = vmatpush.msra.mxu0 %v274
    %329 = vmatpush.msra.mxu0 %v272
    %330 = vmatpush.msra.mxu0 %v270
    %331 = vmatpush.msra.mxu0 %v268
    %332 = vmatpush.msra.mxu0 %v266
    %333 = vmatpush.msra.mxu0 %v264
    %334 = vmatpush.msra.mxu0 %v262
    %335 = vmatmul.f32.gmra.mxu0 %v260
    %v336 = vpop.f32.mrf.mxu0
    %v337 = vadd.f32 %v296, %v336
    %338 = vdwg.mxu0
    %v339 = vadd.f32 %v317, 2.0
    %v340 = vsub.f32 0.0, %v339
    %v341 = vmax.f32 %v340, 0.0
    %v342 = vand.u32 2147483647, %v339
    %v343 = vsub.f32 0.0, %v342
    %v344 = vmul.f32 %v343, 1.442695
    %v345 = vpow.pop %v344
    %v346 = vadd.f32 %v345, 1.0
    %v347 = vlog2.pop %v346
    %v348 = vmul.f32 %v347, 0.6931472
    %v349 = vmul.f32 -0.5, %v345
    %v350 = vadd.f32 %v349, 1.0
    %v351 = vmul.f32 %v350, %v345
    %v352 = vand.u32 2147483647, %v345
    %vm353 = vcmp.lt.f32.partialorder %v352, 0.0004427343
    %v354 = vsel %vm353, %v351, %v348
    %v355 = vadd.f32 %v341, %v354
    %v356 = vsub.f32 0.0, %v355
    %v357 = vsel %vm130, %v356, 0.0
    %358 = vadd.xlane.f32.xlu0 %v357
    %v359 = vpop.xlane.xlu0 %358
    %v360 = vrot.slane %v359, 4
    %v361 = vadd.f32 %v359, %v360
    %v362 = vrot.slane %v361, 2
    %v363 = vadd.f32 %v361, %v362
    %v364 = vrot.slane %v363, 1
    %v365 = vadd.f32 %v363, %v364
    %s366 = vtos %v365
    %v367 = vstv %s366
    %368 = vst [vmem:[#allocation14] sm:$0xff] %v367
    %v369 = vld [vmem:[#allocation2] sm:$0xff]
    %v370 = vmul.f32 %v356, 1.442695
    %v371 = vpow.pop %v370
    %v372 = vmul.f32 %v371, %v369
    %v373 = vadd.f32 %v372, %v337
    %374 = vst.msk [vmem:[#allocation13] sm:$0xff] %vm130, %v373
    // Predicated region
    $region66: #{tpu_custom_call.1} parent=1 // pred_check
      _
    $region67: #{tpu_custom_call.1} parent=1 // pred_check_branch
      %376 = sbr.rel (0) target = $region69
    $region68: #{tpu_custom_call.1} parent=1 // pred_region
      %378 = vsyncadd [#allocation4], 0
      %s380 = sshll.u32 [#allocation13], 4
      %s381 = int_to_ptr.vmem [resolvable:$true] %s380
      %s382 = sshll.u32 %s10, 4
      %s383 = int_to_ptr.hbm [resolvable:$true] %s382
      %385 = dma.vmem_to_hbm [thread:$0]  %s381, 128, %s383, [#allocation4]
    $region69: #{tpu_custom_call.1} parent=1 // pred_fallthru
      _
    // Predicated region
    $region70: #{tpu_custom_call.1} parent=1 // pred_check
      _
    $region71: #{tpu_custom_call.1} parent=1 // pred_check_branch
      %387 = sbr.rel (0) target = $region73
    $region72: #{tpu_custom_call.1} parent=1 // pred_region
      %389 = vsyncadd [#allocation15], 0
      %s391 = sshll.u32 [#allocation14], 4
      %s392 = int_to_ptr.vmem [resolvable:$true] %s391
      %s393 = sshll.u32 %s11, 4
      %s394 = int_to_ptr.hbm [resolvable:$true] %s393
      %396 = dma.vmem_to_hbm [thread:$0]  %s392, 128, %s394, [#allocation15]
    $region73: #{tpu_custom_call.1} parent=1 // pred_fallthru
      _
    // Predicated region
    $region74: #{tpu_custom_call.1} parent=1 // pred_check
      _
    $region75: #{tpu_custom_call.1} parent=1 // pred_check_branch
      %398 = sbr.rel (0) target = $region77
    $region76: #{tpu_custom_call.1} parent=1 // pred_region
      %400 = dma.done [#allocation4], 128
    $region77: #{tpu_custom_call.1} parent=1 // pred_fallthru
      _
    // Predicated region
    $region78: #{tpu_custom_call.1} parent=1 // pred_check
      _
    $region79: #{tpu_custom_call.1} parent=1 // pred_check_branch
      %402 = sbr.rel (0) target = $region81
    $region80: #{tpu_custom_call.1} parent=1 // pred_region
      %404 = dma.done [#allocation15], 128
    $region81: #{tpu_custom_call.1} parent=1 // pred_fallthru
      _
    %405 = vsyncpa [#allocation3], 1
    %406 = vsyncpa [#allocation6], 1
    %407 = vsyncpa [#allocation9], 1
    %408 = vsyncpa [#allocation12], 1
    %409 = vsyncpa [#allocation4], 1
    %410 = vsyncpa [#allocation15], 1

// kernel: tpu_custom_call.1
$region0: #{tpu_custom_call.1}
  #allocation0 [shape = 'u32[]', space=smem, size = 0x4, offset = 0x4, fixed_abs, tag = 'smem constant byte address 0x4 - core index']
  #allocation1 [shape = 'u32[72,128]{1,0:T(1,128)}', space=vmem, size = 0x9000, scoped, tag = 'internal scratch']
  %s0 = inlined_call_operand.hbm [shape: f32[8,8], index: 0, kind: input, shape index: {}]
  %s1 = inlined_call_operand.hbm [shape: f32[8,8], index: 1, kind: input, shape index: {}]
  %s2 = inlined_call_operand.hbm [shape: f32[128,128], index: 2, kind: input, shape index: {}]
  %s3 = inlined_call_operand.vmem [shape: f32[1,128], index: 3, kind: input, shape index: {}]
  %s4 = inlined_call_operand.hbm [shape: f32[128,128], index: 4, kind: input, shape index: {}]
  %s5 = inlined_call_operand.vmem [shape: f32[1,128], index: 5, kind: input, shape index: {}]
  %s6 = inlined_call_operand.hbm [shape: f32[128,128], index: 6, kind: input, shape index: {}]
  %s7 = inlined_call_operand.vmem [shape: f32[1,128], index: 7, kind: input, shape index: {}]
  %s8 = inlined_call_operand.hbm [shape: f32[128,256], index: 8, kind: input, shape index: {}]
  %s9 = inlined_call_operand.vmem [shape: f32[1,256], index: 9, kind: input, shape index: {}]
  %s10 = inlined_call_operand.hbm [shape: f32[8,8], index: 10, kind: output, shape index: {0}]
  %s11 = inlined_call_operand.hbm [shape: f32[1,8,128], index: 11, kind: output, shape index: {1}]
  %12 = xla_tuple %s10, %s11
  %s13 = sld [smem:[#allocation0]]
  $region82: #{tpu_custom_call.1} parent=0
    _
  %s15 = ssub.s32 1, %s13
  %s16 = scalar_select 0, %s15, %s13
  $region1: #{tpu_custom_call.1} parent=0
    #allocation2 [shape = 'u8[4096]{0}', space=vmem, size = 0x1000, scoped, tag = 'input window, operand 0, single buffered']
    #allocation3 [shape = 's32[1]{0}', space=sflag, size = 0x4, scoped, tag = 'scoped memory for tpu_custom_call.1']
    #allocation4 [shape = 's32[1]{0}', space=sflag, size = 0x4, scoped, tag = 'scoped memory for tpu_custom_call.1']
    #allocation5 [shape = 'u8[4096]{0}', space=vmem, size = 0x1000, scoped, tag = 'input window, operand 1, single buffered']
    #allocation6 [shape = 's32[1]{0}', space=sflag, size = 0x4, scoped, tag = 'scoped memory for tpu_custom_call.1']
    #allocation7 [shape = 'u8[65536]{0}', space=vmem, size = 0x10000, scoped, tag = 'input window, operand 2, single buffered']
    #allocation8 [shape = 'u8[65536]{0}', space=vmem, size = 0x10000, scoped, tag = 'input window, operand 4, single buffered']
    #allocation9 [shape = 's32[1]{0}', space=sflag, size = 0x4, scoped, tag = 'scoped memory for tpu_custom_call.1']
    #allocation10 [shape = 'u8[65536]{0}', space=vmem, size = 0x10000, scoped, tag = 'input window, operand 6, single buffered']
    #allocation11 [shape = 'u8[131072]{0}', space=vmem, size = 0x20000, scoped, tag = 'input window, operand 8, single buffered']
    #allocation12 [shape = 's32[1]{0}', space=sflag, size = 0x4, scoped, tag = 'scoped memory for tpu_custom_call.1']
    #allocation13 [shape = 'u8[4096]{0}', space=vmem, size = 0x1000, scoped, tag = 'output window, operand 0, single buffered']
    #allocation14 [shape = 'u8[4096]{0}', space=vmem, size = 0x1000, scoped, tag = 'output window, operand 1, single buffered']
    #allocation15 [shape = 's32[1]{0}', space=sflag, size = 0x4, scoped, tag = 'scoped memory for tpu_custom_call.1']
    %17 = vsyncpa [#allocation3], 0
    %18 = vsyncpa [#allocation6], 0
    %19 = vsyncpa [#allocation9], 0
    %20 = vsyncpa [#allocation12], 0
    %21 = vsyncpa [#allocation4], 0
    %22 = vsyncpa [#allocation15], 0
    // Predicated region
    $region2: #{tpu_custom_call.1} parent=1 // pred_check
      _
    $region3: #{tpu_custom_call.1} parent=1 // pred_check_branch
      %24 = sbr.rel (0) target = $region5
    $region4: #{tpu_custom_call.1} parent=1 // pred_region
      %26 = vsyncadd [#allocation3], 0
      %s28 = sshll.u32 %s0, 4
      %s29 = int_to_ptr.hbm [resolvable:$true] %s28
      %s30 = sshll.u32 [#allocation2], 4
      %s31 = int_to_ptr.vmem [resolvable:$true] %s30
      %33 = dma.hbm_to_vmem [thread:$0]  %s29, 128, %s31, [#allocation3]
    $region5: #{tpu_custom_call.1} parent=1 // pred_fallthru
      _
    // Predicated region
    $region6: #{tpu_custom_call.1} parent=1 // pred_check
      _
    $region7: #{tpu_custom_call.1} parent=1 // pred_check_branch
      %35 = sbr.rel (0) target = $region9
    $region8: #{tpu_custom_call.1} parent=1 // pred_region
      %37 = vsyncadd [#allocation6], 0
      %s39 = sshll.u32 %s1, 4
      %s40 = int_to_ptr.hbm [resolvable:$true] %s39
      %s41 = sshll.u32 [#allocation5], 4
      %s42 = int_to_ptr.vmem [resolvable:$true] %s41
      %44 = dma.hbm_to_vmem [thread:$0]  %s40, 128, %s42, [#allocation6]
    $region9: #{tpu_custom_call.1} parent=1 // pred_fallthru
      _
    // Predicated region
    $region10: #{tpu_custom_call.1} parent=1 // pred_check
      _
    $region11: #{tpu_custom_call.1} parent=1 // pred_check_branch
      %46 = sbr.rel (0) target = $region13
    $region12: #{tpu_custom_call.1} parent=1 // pred_region
      %48 = vsyncadd [#allocation6], 0
      %s49 = sshll.u32 %s2, 4
      %s50 = int_to_ptr.hbm [resolvable:$true] %s49
      %s51 = sshll.u32 [#allocation7], 4
      %s52 = int_to_ptr.vmem [resolvable:$true] %s51
      %57 = dma.hbm_to_vmem [thread:$0]  %s50, 2048, %s52, [#allocation6], 128, 128, 8
    $region13: #{tpu_custom_call.1} parent=1 // pred_fallthru
      _
    // Predicated region
    $region14: #{tpu_custom_call.1} parent=1 // pred_check
      _
    $region15: #{tpu_custom_call.1} parent=1 // pred_check_branch
      %59 = sbr.rel (0) target = $region17
    $region16: #{tpu_custom_call.1} parent=1 // pred_region
      _
    $region17: #{tpu_custom_call.1} parent=1 // pred_fallthru
      _
    // Predicated region
    $region18: #{tpu_custom_call.1} parent=1 // pred_check
      _
    $region19: #{tpu_custom_call.1} parent=1 // pred_check_branch
      %61 = sbr.rel (0) target = $region21
    $region20: #{tpu_custom_call.1} parent=1 // pred_region
      %63 = vsyncadd [#allocation9], 0
      %s64 = sshll.u32 %s4, 4
      %s65 = int_to_ptr.hbm [resolvable:$true] %s64
      %s66 = sshll.u32 [#allocation8], 4
      %s67 = int_to_ptr.vmem [resolvable:$true] %s66
      %72 = dma.hbm_to_vmem [thread:$0]  %s65, 2048, %s67, [#allocation9], 128, 128, 8
    $region21: #{tpu_custom_call.1} parent=1 // pred_fallthru
      _
    // Predicated region
    $region22: #{tpu_custom_call.1} parent=1 // pred_check
      _
    $region23: #{tpu_custom_call.1} parent=1 // pred_check_branch
      %74 = sbr.rel (0) target = $region25
    $region24: #{tpu_custom_call.1} parent=1 // pred_region
      _
    $region25: #{tpu_custom_call.1} parent=1 // pred_fallthru
      _
    // Predicated region
    $region26: #{tpu_custom_call.1} parent=1 // pred_check
      _
    $region27: #{tpu_custom_call.1} parent=1 // pred_check_branch
      %76 = sbr.rel (0) target = $region29
    $region28: #{tpu_custom_call.1} parent=1 // pred_region
      %78 = vsyncadd [#allocation9], 0
      %s79 = sshll.u32 %s6, 4
      %s80 = int_to_ptr.hbm [resolvable:$true] %s79
      %s81 = sshll.u32 [#allocation10], 4
      %s82 = int_to_ptr.vmem [resolvable:$true] %s81
      %87 = dma.hbm_to_vmem [thread:$0]  %s80, 2048, %s82, [#allocation9], 128, 128, 8
    $region29: #{tpu_custom_call.1} parent=1 // pred_fallthru
      _
    // Predicated region
    $region30: #{tpu_custom_call.1} parent=1 // pred_check
      _
    $region31: #{tpu_custom_call.1} parent=1 // pred_check_branch
      %89 = sbr.rel (0) target = $region33
    $region32: #{tpu_custom_call.1} parent=1 // pred_region
      _
    $region33: #{tpu_custom_call.1} parent=1 // pred_fallthru
      _
    // Predicated region
    $region34: #{tpu_custom_call.1} parent=1 // pred_check
      _
    $region35: #{tpu_custom_call.1} parent=1 // pred_check_branch
      %91 = sbr.rel (0) target = $region37
    $region36: #{tpu_custom_call.1} parent=1 // pred_region
      %93 = vsyncadd [#allocation12], 0
      %s94 = sshll.u32 %s8, 4
      %s95 = int_to_ptr.hbm [resolvable:$true] %s94
      %s96 = sshll.u32 [#allocation11], 4
      %s97 = int_to_ptr.vmem [resolvable:$true] %s96
      %102 = dma.hbm_to_vmem [thread:$0]  %s95, 4096, %s97, [#allocation12], 256, 256, 16
    $region37: #{tpu_custom_call.1} parent=1 // pred_fallthru
      _
    // Predicated region
    $region38: #{tpu_custom_call.1} parent=1 // pred_check
      _
    $region39: #{tpu_custom_call.1} parent=1 // pred_check_branch
      %104 = sbr.rel (0) target = $region41
    $region40: #{tpu_custom_call.1} parent=1 // pred_region
      _
    $region41: #{tpu_custom_call.1} parent=1 // pred_fallthru
      _
    // Predicated region
    $region42: #{tpu_custom_call.1} parent=1 // pred_check
      _
    $region43: #{tpu_custom_call.1} parent=1 // pred_check_branch
      %106 = sbr.rel (0) target = $region45
    $region44: #{tpu_custom_call.1} parent=1 // pred_region
      %108 = dma.done [#allocation3], 128
    $region45: #{tpu_custom_call.1} parent=1 // pred_fallthru
      _
    // Predicated region
    $region46: #{tpu_custom_call.1} parent=1 // pred_check
      _
    $region47: #{tpu_custom_call.1} parent=1 // pred_check_branch
      %110 = sbr.rel (0) target = $region49
    $region48: #{tpu_custom_call.1} parent=1 // pred_region
      %112 = dma.done [#allocation6], 128
    $region49: #{tpu_custom_call.1} parent=1 // pred_fallthru
      _
    // Predicated region
    $region50: #{tpu_custom_call.1} parent=1 // pred_check
      _
    $region51: #{tpu_custom_call.1} parent=1 // pred_check_branch
      %114 = sbr.rel (0) target = $region53
    $region52: #{tpu_custom_call.1} parent=1 // pred_region
      %116 = dma.done [#allocation6], 2048
    $region53: #{tpu_custom_call.1} parent=1 // pred_fallthru
      _
    // Predicated region
    $region54: #{tpu_custom_call.1} parent=1 // pred_check
      _
    $region55: #{tpu_custom_call.1} parent=1 // pred_check_branch
      %118 = sbr.rel (0) target = $region57
    $region56: #{tpu_custom_call.1} parent=1 // pred_region
      %120 = dma.done [#allocation9], 2048
    $region57: #{tpu_custom_call.1} parent=1 // pred_fallthru
      _
    // Predicated region
    $region58: #{tpu_custom_call.1} parent=1 // pred_check
      _
    $region59: #{tpu_custom_call.1} parent=1 // pred_check_branch
      %122 = sbr.rel (0) target = $region61
    $region60: #{tpu_custom_call.1} parent=1 // pred_region
      %124 = dma.done [#allocation9], 2048
    $region61: #{tpu_custom_call.1} parent=1 // pred_fallthru
      _
    // Predicated region
    $region62: #{tpu_custom_call.1} parent=1 // pred_check
      _
    $region63: #{tpu_custom_call.1} parent=1 // pred_check_branch
      %126 = sbr.rel (0) target = $region65
    $region64: #{tpu_custom_call.1} parent=1 // pred_region
      %128 = dma.done [#allocation12], 4096
    $region65: #{tpu_custom_call.1} parent=1 // pred_fallthru
      _
    %v129 = vld [vmem:[#allocation5] sm:$0xff]
    %vm130 = vcmask 64512
    %v131 = vsel %vm130, %v129, 0.0
    %v132 = vld [vmem:[#allocation7] sm:$0xff]
    %v133 = vld [vmem:[#allocation7 + $0x8] sm:$0xff]
    %v134 = vld [vmem:[#allocation7 + $0x10] sm:$0xff]
    %v135 = vld [vmem:[#allocation7 + $0x18] sm:$0xff]
    %v136 = vld [vmem:[#allocation7 + $0x20] sm:$0xff]
    %v137 = vld [vmem:[#allocation7 + $0x28] sm:$0xff]
    %v138 = vld [vmem:[#allocation7 + $0x30] sm:$0xff]
    %v139 = vld [vmem:[#allocation7 + $0x38] sm:$0xff]
    %v140 = vld [vmem:[#allocation7 + $0x40] sm:$0xff]
    %v141 = vld [vmem:[#allocation7 + $0x48] sm:$0xff]
    %v142 = vld [vmem:[#allocation7 + $0x50] sm:$0xff]
    %v143 = vld [vmem:[#allocation7 + $0x58] sm:$0xff]
    %v144 = vld [vmem:[#allocation7 + $0x60] sm:$0xff]
    %v145 = vld [vmem:[#allocation7 + $0x68] sm:$0xff]
    %v146 = vld [vmem:[#allocation7 + $0x70] sm:$0xff]
    %v147 = vld [vmem:[#allocation7 + $0x78] sm:$0xff]
    %v148 = vld [vmem:[%s3] sm:$0x1]
    %v150 = vperm.slane %v148, 0
    %152 = vmatpush.msra.mxu0 %v147
    %153 = vmatpush.msra.mxu0 %v146
    %154 = vmatpush.msra.mxu0 %v145
    %155 = vmatpush.msra.mxu0 %v144
    %156 = vmatpush.msra.mxu0 %v143
    %157 = vmatpush.msra.mxu0 %v142
    %158 = vmatpush.msra.mxu0 %v141
    %159 = vmatpush.msra.mxu0 %v140
    %160 = vmatpush.msra.mxu0 %v139
    %161 = vmatpush.msra.mxu0 %v138
    %162 = vmatpush.msra.mxu0 %v137
    %163 = vmatpush.msra.mxu0 %v136
    %164 = vmatpush.msra.mxu0 %v135
    %165 = vmatpush.msra.mxu0 %v134
    %166 = vmatpush.msra.mxu0 %v133
    %167 = vmatpush.msra.mxu0 %v132
    %168 = vmatmul.f32.gmra.mxu0 %v131
    %v169 = vpop.f32.mrf.mxu0
    %v170 = vadd.f32 %v150, %v169
    %171 = vdwg.mxu0
    %vm172 = vcmp.gt.f32.partialorder %v170, 0.0
    %v173 = vmul.f32 %v170, 0.01
    %v174 = vsel %vm172, %v170, %v173
    %v175 = vld [vmem:[#allocation8] sm:$0xff]
    %v176 = vld [vmem:[#allocation8 + $0x8] sm:$0xff]
    %v177 = vld [vmem:[#allocation8 + $0x10] sm:$0xff]
    %v178 = vld [vmem:[#allocation8 + $0x18] sm:$0xff]
    %v179 = vld [vmem:[#allocation8 + $0x20] sm:$0xff]
    %v180 = vld [vmem:[#allocation8 + $0x28] sm:$0xff]
    %v181 = vld [vmem:[#allocation8 + $0x30] sm:$0xff]
    %v182 = vld [vmem:[#allocation8 + $0x38] sm:$0xff]
    %v183 = vld [vmem:[#allocation8 + $0x40] sm:$0xff]
    %v184 = vld [vmem:[#allocation8 + $0x48] sm:$0xff]
    %v185 = vld [vmem:[#allocation8 + $0x50] sm:$0xff]
    %v186 = vld [vmem:[#allocation8 + $0x58] sm:$0xff]
    %v187 = vld [vmem:[#allocation8 + $0x60] sm:$0xff]
    %v188 = vld [vmem:[#allocation8 + $0x68] sm:$0xff]
    %v189 = vld [vmem:[#allocation8 + $0x70] sm:$0xff]
    %v190 = vld [vmem:[#allocation8 + $0x78] sm:$0xff]
    %v191 = vld [vmem:[%s5] sm:$0x1]
    %v193 = vperm.slane %v191, 0
    %195 = vmatpush.msra.mxu0 %v190
    %196 = vmatpush.msra.mxu0 %v189
    %197 = vmatpush.msra.mxu0 %v188
    %198 = vmatpush.msra.mxu0 %v187
    %199 = vmatpush.msra.mxu0 %v186
    %200 = vmatpush.msra.mxu0 %v185
    %201 = vmatpush.msra.mxu0 %v184
    %202 = vmatpush.msra.mxu0 %v183
    %203 = vmatpush.msra.mxu0 %v182
    %204 = vmatpush.msra.mxu0 %v181
    %205 = vmatpush.msra.mxu0 %v180
    %206 = vmatpush.msra.mxu0 %v179
    %207 = vmatpush.msra.mxu0 %v178
    %208 = vmatpush.msra.mxu0 %v177
    %209 = vmatpush.msra.mxu0 %v176
    %210 = vmatpush.msra.mxu0 %v175
    %211 = vmatmul.f32.gmra.mxu0 %v174
    %v212 = vpop.f32.mrf.mxu0
    %v213 = vadd.f32 %v193, %v212
    %214 = vdwg.mxu0
    %vm215 = vcmp.gt.f32.partialorder %v213, 0.0
    %v216 = vmul.f32 %v213, 0.01
    %v217 = vsel %vm215, %v213, %v216
    %v218 = vld [vmem:[#allocation10] sm:$0xff]
    %v219 = vld [vmem:[#allocation10 + $0x8] sm:$0xff]
    %v220 = vld [vmem:[#allocation10 + $0x10] sm:$0xff]
    %v221 = vld [vmem:[#allocation10 + $0x18] sm:$0xff]
    %v222 = vld [vmem:[#allocation10 + $0x20] sm:$0xff]
    %v223 = vld [vmem:[#allocation10 + $0x28] sm:$0xff]
    %v224 = vld [vmem:[#allocation10 + $0x30] sm:$0xff]
    %v225 = vld [vmem:[#allocation10 + $0x38] sm:$0xff]
    %v226 = vld [vmem:[#allocation10 + $0x40] sm:$0xff]
    %v227 = vld [vmem:[#allocation10 + $0x48] sm:$0xff]
    %v228 = vld [vmem:[#allocation10 + $0x50] sm:$0xff]
    %v229 = vld [vmem:[#allocation10 + $0x58] sm:$0xff]
    %v230 = vld [vmem:[#allocation10 + $0x60] sm:$0xff]
    %v231 = vld [vmem:[#allocation10 + $0x68] sm:$0xff]
    %v232 = vld [vmem:[#allocation10 + $0x70] sm:$0xff]
    %v233 = vld [vmem:[#allocation10 + $0x78] sm:$0xff]
    %v234 = vld [vmem:[%s7] sm:$0x1]
    %v236 = vperm.slane %v234, 0
    %238 = vmatpush.msra.mxu0 %v233
    %239 = vmatpush.msra.mxu0 %v232
    %240 = vmatpush.msra.mxu0 %v231
    %241 = vmatpush.msra.mxu0 %v230
    %242 = vmatpush.msra.mxu0 %v229
    %243 = vmatpush.msra.mxu0 %v228
    %244 = vmatpush.msra.mxu0 %v227
    %245 = vmatpush.msra.mxu0 %v226
    %246 = vmatpush.msra.mxu0 %v225
    %247 = vmatpush.msra.mxu0 %v224
    %248 = vmatpush.msra.mxu0 %v223
    %249 = vmatpush.msra.mxu0 %v222
    %250 = vmatpush.msra.mxu0 %v221
    %251 = vmatpush.msra.mxu0 %v220
    %252 = vmatpush.msra.mxu0 %v219
    %253 = vmatpush.msra.mxu0 %v218
    %254 = vmatmul.f32.gmra.mxu0 %v217
    %v255 = vpop.f32.mrf.mxu0
    %v256 = vadd.f32 %v236, %v255
    %257 = vdwg.mxu0
    %vm258 = vcmp.gt.f32.partialorder %v256, 0.0
    %v259 = vmul.f32 %v256, 0.01
    %v260 = vsel %vm258, %v256, %v259
    %v261 = vld [vmem:[#allocation11] sm:$0xff]
    %v262 = vld [vmem:[#allocation11 + $0x8] sm:$0xff]
    %v263 = vld [vmem:[#allocation11 + $0x10] sm:$0xff]
    %v264 = vld [vmem:[#allocation11 + $0x18] sm:$0xff]
    %v265 = vld [vmem:[#allocation11 + $0x20] sm:$0xff]
    %v266 = vld [vmem:[#allocation11 + $0x28] sm:$0xff]
    %v267 = vld [vmem:[#allocation11 + $0x30] sm:$0xff]
    %v268 = vld [vmem:[#allocation11 + $0x38] sm:$0xff]
    %v269 = vld [vmem:[#allocation11 + $0x40] sm:$0xff]
    %v270 = vld [vmem:[#allocation11 + $0x48] sm:$0xff]
    %v271 = vld [vmem:[#allocation11 + $0x50] sm:$0xff]
    %v272 = vld [vmem:[#allocation11 + $0x58] sm:$0xff]
    %v273 = vld [vmem:[#allocation11 + $0x60] sm:$0xff]
    %v274 = vld [vmem:[#allocation11 + $0x68] sm:$0xff]
    %v275 = vld [vmem:[#allocation11 + $0x70] sm:$0xff]
    %v276 = vld [vmem:[#allocation11 + $0x78] sm:$0xff]
    %v277 = vld [vmem:[#allocation11 + $0x80] sm:$0xff]
    %v278 = vld [vmem:[#allocation11 + $0x88] sm:$0xff]
    %v279 = vld [vmem:[#allocation11 + $0x90] sm:$0xff]
    %v280 = vld [vmem:[#allocation11 + $0x98] sm:$0xff]
    %v281 = vld [vmem:[#allocation11 + $0xa0] sm:$0xff]
    %v282 = vld [vmem:[#allocation11 + $0xa8] sm:$0xff]
    %v283 = vld [vmem:[#allocation11 + $0xb0] sm:$0xff]
    %v284 = vld [vmem:[#allocation11 + $0xb8] sm:$0xff]
    %v285 = vld [vmem:[#allocation11 + $0xc0] sm:$0xff]
    %v286 = vld [vmem:[#allocation11 + $0xc8] sm:$0xff]
    %v287 = vld [vmem:[#allocation11 + $0xd0] sm:$0xff]
    %v288 = vld [vmem:[#allocation11 + $0xd8] sm:$0xff]
    %v289 = vld [vmem:[#allocation11 + $0xe0] sm:$0xff]
    %v290 = vld [vmem:[#allocation11 + $0xe8] sm:$0xff]
    %v291 = vld [vmem:[#allocation11 + $0xf0] sm:$0xff]
    %v292 = vld [vmem:[#allocation11 + $0xf8] sm:$0xff]
    %v293 = vld [vmem:[%s9] sm:$0x3]
    %v295 = vperm.slane %v293, 0
    %v296 = vperm.slane %v293, 1
    %299 = vmatpush.msra.mxu0 %v291
    %300 = vmatpush.msra.mxu0 %v289
    %301 = vmatpush.msra.mxu0 %v287
    %302 = vmatpush.msra.mxu0 %v285
    %303 = vmatpush.msra.mxu0 %v283
    %304 = vmatpush.msra.mxu0 %v281
    %305 = vmatpush.msra.mxu0 %v279
    %306 = vmatpush.msra.mxu0 %v277
    %307 = vmatpush.msra.mxu0 %v275
    %308 = vmatpush.msra.mxu0 %v273
    %309 = vmatpush.msra.mxu0 %v271
    %310 = vmatpush.msra.mxu0 %v269
    %311 = vmatpush.msra.mxu0 %v267
    %312 = vmatpush.msra.mxu0 %v265
    %313 = vmatpush.msra.mxu0 %v263
    %314 = vmatpush.msra.mxu0 %v261
    %315 = vmatmul.f32.gmra.mxu0 %v260
    %v316 = vpop.f32.mrf.mxu0
    %v317 = vadd.f32 %v295, %v316
    %318 = vdwg.mxu0
    %319 = vmatpush.msra.mxu0 %v292
    %320 = vmatpush.msra.mxu0 %v290
    %321 = vmatpush.msra.mxu0 %v288
    %322 = vmatpush.msra.mxu0 %v286
    %323 = vmatpush.msra.mxu0 %v284
    %324 = vmatpush.msra.mxu0 %v282
    %325 = vmatpush.msra.mxu0 %v280
    %326 = vmatpush.msra.mxu0 %v278
    %327 = vmatpush.msra.mxu0 %v276
    %328 = vmatpush.msra.mxu0 %v274
    %329 = vmatpush.msra.mxu0 %v272
    %330 = vmatpush.msra.mxu0 %v270
    %331 = vmatpush.msra.mxu0 %v268
    %332 = vmatpush.msra.mxu0 %v266
    %333 = vmatpush.msra.mxu0 %v264
    %334 = vmatpush.msra.mxu0 %v262
    %335 = vmatmul.f32.gmra.mxu0 %v260
    %v336 = vpop.f32.mrf.mxu0
    %v337 = vadd.f32 %v296, %v336
    %338 = vdwg.mxu0
    %v339 = vadd.f32 %v317, 2.0
    %v340 = vsub.f32 0.0, %v339
    %v341 = vmax.f32 %v340, 0.0
    %v342 = vand.u32 2147483647, %v339
    %v343 = vsub.f32 0.0, %v342
    %v344 = vmul.f32 %v343, 1.442695
    %v345 = vpow.pop %v344
    %v346 = vadd.f32 %v345, 1.0
    %v347 = vlog2.pop %v346
    %v348 = vmul.f32 %v347, 0.6931472
    %v349 = vmul.f32 -0.5, %v345
    %v350 = vadd.f32 %v349, 1.0
    %v351 = vmul.f32 %v350, %v345
    %v352 = vand.u32 2147483647, %v345
    %vm353 = vcmp.lt.f32.partialorder %v352, 0.0004427343
    %v354 = vsel %vm353, %v351, %v348
    %v355 = vadd.f32 %v341, %v354
    %v356 = vsub.f32 0.0, %v355
    %v357 = vsel %vm130, %v356, 0.0
    %358 = vadd.xlane.f32.xlu0 %v357
    %v359 = vpop.xlane.xlu0 %358
    %v360 = vrot.slane %v359, 4
    %v361 = vadd.f32 %v359, %v360
    %v362 = vrot.slane %v361, 2
    %v363 = vadd.f32 %v361, %v362
    %v364 = vrot.slane %v363, 1
    %v365 = vadd.f32 %v363, %v364
    %s366 = vtos %v365
    %v367 = vstv %s366
    %368 = vst [vmem:[#allocation14] sm:$0xff] %v367
    %v369 = vld [vmem:[#allocation2] sm:$0xff]
    %v370 = vmul.f32 %v356, 1.442695
    %v371 = vpow.pop %v370
    %v372 = vmul.f32 %v371, %v369
    %v373 = vadd.f32 %v372, %v337
    %374 = vst.msk [vmem:[#allocation13] sm:$0xff] %vm130, %v373
    // Predicated region
    $region66: #{tpu_custom_call.1} parent=1 // pred_check
      _
    $region67: #{tpu_custom_call.1} parent=1 // pred_check_branch
      %376 = sbr.rel (0) target = $region69
    $region68: #{tpu_custom_call.1} parent=1 // pred_region
      %378 = vsyncadd [#allocation4], 0
      %s380 = sshll.u32 [#allocation13], 4
      %s381 = int_to_ptr.vmem [resolvable:$true] %s380
      %s382 = sshll.u32 %s10, 4
      %s383 = int_to_ptr.hbm [resolvable:$true] %s382
      %385 = dma.vmem_to_hbm [thread:$0]  %s381, 128, %s383, [#allocation4]
    $region69: #{tpu_custom_call.1} parent=1 // pred_fallthru
      _
    // Predicated region
    $region70: #{tpu_custom_call.1} parent=1 // pred_check
      _
    $region71: #{tpu_custom_call.1} parent=1 // pred_check_branch
      %387 = sbr.rel (0) target = $region73
    $region72: #{tpu_custom_call.1} parent=1 // pred_region
      %389 = vsyncadd [#allocation15], 0
      %s391 = sshll.u32 [#allocation14], 4
      %s392 = int_to_ptr.vmem [resolvable:$true] %s391
      %s393 = sshll.u32 %s11, 4
      %s394 = int_to_ptr.hbm [resolvable:$true] %s393
      %396 = dma.vmem_to_hbm [thread:$0]  %s392, 128, %s394, [#allocation15]
    $region73: #{tpu_custom_call.1} parent=1 // pred_fallthru
      _
    // Predicated region
    $region74: #{tpu_custom_call.1} parent=1 // pred_check
      _
    $region75: #{tpu_custom_call.1} parent=1 // pred_check_branch
      %398 = sbr.rel (0) target = $region77
    $region76: #{tpu_custom_call.1} parent=1 // pred_region
      %400 = dma.done [#allocation4], 128
    $region77: #{tpu_custom_call.1} parent=1 // pred_fallthru
      _
    // Predicated region
    $region78: #{tpu_custom_call.1} parent=1 // pred_check
      _
    $region79: #{tpu_custom_call.1} parent=1 // pred_check_branch
      %402 = sbr.rel (0) target = $region81
    $region80: #{tpu_custom_call.1} parent=1 // pred_region
      %404 = dma.done [#allocation15], 128
    $region81: #{tpu_custom_call.1} parent=1 // pred_fallthru
      _
    %405 = vsyncpa [#allocation3], 1
    %406 = vsyncpa [#allocation6], 1
    %407 = vsyncpa [#allocation9], 1
    %408 = vsyncpa [#allocation12], 1
    %409 = vsyncpa [#allocation4], 1
    %410 = vsyncpa [#allocation15], 1

</llo_original>
